<compile_context>
chip_gen: v7x
topology: tpu7x:2x2x1
jax: 0.10.0
libtpu: 0.0.40
codegen_flags: <defaults>
</compile_context>

<pallas_src>
import functools

import jax
import jax.numpy as jnp
from jax.experimental import pallas as pl
from jax.experimental.pallas import tpu as pltpu

# ---- small synthetic BERT config (bert-base-german-cased scaled down) ----
VOCAB = 128
HIDDEN = 32
N_LAYERS = 2
N_HEADS = 2
HEAD_DIM = HIDDEN // N_HEADS
INTERMEDIATE = 64
MAX_POS = 16
TYPE_VOCAB = 2
NUM_LABELS = 2
LN_EPS = 1e-12
MASK_NEG = -1e9  # HF uses finfo(dtype).min; -1e9 keeps softmax well-behaved

# TODO(synk): at production BERT sizes (H=768, S>=512) tile M=B*S into >=256
# row blocks, keep N/K multiples of 128, set vmem_limit_bytes explicitly for
# v7x's 64 MiB VMEM and use pl.Buffered on the large FFN weight blocks.


# ---------------------- fused encoder kernel (per layer) ----------------------

def _encoder_layer_kernel(emb_ref, mask_ref,
                          wqkv_ref, bqkv_ref, wo_ref, bo_ref,
                          ln1g_ref, ln1b_ref, wi_ref, bi_ref,
                          wf_ref, bf_ref, ln2g_ref, ln2b_ref,
                          out_ref, *, n_heads):
    """Grid = (batch_block, layer).  One step = one layer for one batch block.

    The hidden state is carried in out_ref itself: its block index depends
    only on the batch axis, so the VMEM block stays resident across the
    (sequential, 'arbitrary') layer axis and is written back to HBM once per
    batch block."""
    layer = pl.program_id(1)
    S, H = out_ref.shape
    head_dim = H // n_heads
    groups = 3 * n_heads
    scale = 1.0 / (head_dim ** 0.5)

    def layernorm(v, g, b):
        mean = jnp.mean(v, axis=-1, keepdims=True)
        cen = v - mean
        var = jnp.mean(cen * cen, axis=-1, keepdims=True)
        return cen * jax.lax.rsqrt(var + LN_EPS) * g + b

    # Initialise the carried hidden state from the (already LayerNorm'ed)
    # embeddings at the first layer of each batch block.
    @pl.when(layer == 0)
    def _():
        out_ref[...] = emb_ref[...]

    x = out_ref[...]                                            # (S, H) f32

    # ---- self-attention ----------------------------------------------------
    # QKV projection with heads on a leading (non-lane) dim: one batched
    # matmul over the 3*n_heads groups (no in-lane head slicing, no unroll).
    xb = jnp.broadcast_to(x.astype(jnp.bfloat16), (groups, S, H))
    qkv = jnp.einsum("gsh,ghd->gsd", xb, wqkv_ref[0],
                     preferred_element_type=jnp.float32) + bqkv_ref[0]
    q = (qkv[0:n_heads] * scale).astype(jnp.bfloat16)           # (nh, S, Dh)
    k = qkv[n_heads:2 * n_heads].astype(jnp.bfloat16)           # (nh, S, Dh)
    v = qkv[2 * n_heads:].astype(jnp.bfloat16)                  # (nh, S, Dh)

    s = jnp.einsum("nqd,nkd->nqk", q, k,
                   preferred_element_type=jnp.float32)          # (nh, S, S)
    s = s + mask_ref[...]                       # (1,1,S) additive key mask
    s = s - jnp.max(s, axis=-1, keepdims=True)
    p = jnp.exp(s)
    p = p * pl.reciprocal(jnp.sum(p, axis=-1, keepdims=True), approx=True)

    ctx = jnp.einsum("nqk,nkd->nqd", p.astype(jnp.bfloat16), v,
                     preferred_element_type=jnp.float32)        # (nh, S, Dh)
    # head-concat fused into the output projection (sum over heads)
    proj = jnp.einsum("nsd,ndh->nsh", ctx.astype(jnp.bfloat16), wo_ref[0],
                      preferred_element_type=jnp.float32)       # (nh, S, H)
    attn = jnp.sum(proj, axis=0) + bo_ref[0]                    # (S, H)

    x = layernorm(attn + x, ln1g_ref[0], ln1b_ref[0])

    # ---- feed-forward ------------------------------------------------------
    inter = jnp.dot(x.astype(jnp.bfloat16), wi_ref[0],
                    preferred_element_type=jnp.float32) + bi_ref[0]
    # TODO(synk): HF BERT default is exact erf-GELU; tanh approximation here.
    inter = 0.5 * inter * (1.0 + jnp.tanh(
        0.7978845608028654 * (inter + 0.044715 * inter * inter * inter)))
    ff = jnp.dot(inter.astype(jnp.bfloat16), wf_ref[0],
                 preferred_element_type=jnp.float32) + bf_ref[0]
    x = layernorm(ff + x, ln2g_ref[0], ln2b_ref[0])

    out_ref[...] = x


def encoder(params, emb, mask_bias):
    """emb: (B*S, H) f32 post-LN embeddings; mask_bias: (B, 1, S) additive bias."""
    BS, H = emb.shape
    B = mask_bias.shape[0]
    S = BS // B
    L = params["wqkv"].shape[0]
    I = params["wi"].shape[-1]
    nh = N_HEADS
    dh = H // nh

    def per_layer(shape):
        nd = len(shape)
        return pl.BlockSpec(shape, lambda b, l, _nd=nd: (l,) + (0,) * (_nd - 1))

    grid_spec = pltpu.PrefetchScalarGridSpec(
        num_scalar_prefetch=0,
        grid=(B, L),
        in_specs=[
            pl.BlockSpec((S, H), lambda b, l: (b, 0)),        # emb (post-LN)
            pl.BlockSpec((1, 1, S), lambda b, l: (b, 0, 0)),  # additive mask bias
            per_layer((1, 3 * nh, H, dh)),   # fused QKV weight, head-major groups
            per_layer((1, 3 * nh, 1, dh)),   # fused QKV bias
            per_layer((1, nh, dh, H)),       # attention output weight (per head)
            per_layer((1, 1, H)),            # attention output bias
            per_layer((1, 1, H)),            # LN1 gamma
            per_layer((1, 1, H)),            # LN1 beta
            per_layer((1, H, I)),            # intermediate weight
            per_layer((1, 1, I)),            # intermediate bias
            per_layer((1, I, H)),            # FFN output weight
            per_layer((1, 1, H)),            # FFN output bias
            per_layer((1, 1, H)),            # LN2 gamma
            per_layer((1, 1, H)),            # LN2 beta
        ],
        out_specs=pl.BlockSpec((S, H), lambda b, l: (b, 0)),  # carried hidden state
    )

    # advisory cost estimate so XLA schedules the surrounding ops correctly
    flops = B * L * (8 * S * H * H + 4 * S * S * H + 4 * S * H * I)
    transcendentals = B * L * (nh * S * S + S * I + 2 * S)
    w_bytes = (4 * H * H + 2 * H * I) * 2 + (8 * H + I) * 4   # bf16 weights + f32 bias/LN
    bytes_accessed = B * L * w_bytes + 4 * BS * H * 4

    return pl.pallas_call(
        functools.partial(_encoder_layer_kernel, n_heads=nh),
        out_shape=jax.ShapeDtypeStruct((BS, H), jnp.float32),
        grid_spec=grid_spec,
        compiler_params=pltpu.CompilerParams(
            dimension_semantics=("parallel", "arbitrary")),   # batches || , layers seq
        cost_estimate=pl.CostEstimate(flops=flops,
                                      transcendentals=transcendentals,
                                      bytes_accessed=bytes_accessed),
    )(emb, mask_bias,
      params["wqkv"], params["bqkv"], params["wo"], params["bo"],
      params["ln1_g"], params["ln1_b"], params["wi"], params["bi"],
      params["wf"], params["bf"], params["ln2_g"], params["ln2_b"])


# ------------------------- parameters (synthetic) --------------------------

def init_params(key):
    def dense(k, fi, fo):
        return jax.random.normal(k, (fi, fo), jnp.float32) * 0.02

    nh, dh = N_HEADS, HEAD_DIM
    keys = iter(jax.random.split(key, 3 + 6 * N_LAYERS + 1))
    p = {
        "word_emb": jax.random.normal(next(keys), (VOCAB, HIDDEN), jnp.float32) * 0.02,
        "pos_emb": jax.random.normal(next(keys), (MAX_POS, HIDDEN), jnp.float32) * 0.02,
        "type_emb": jax.random.normal(next(keys), (TYPE_VOCAB, HIDDEN), jnp.float32) * 0.02,
        "emb_ln_g": jnp.ones((HIDDEN,), jnp.float32),
        "emb_ln_b": jnp.zeros((HIDDEN,), jnp.float32),
    }

    def head_major(w):  # (H, H) -> (nh, H, dh), heads on the leading dim
        return w.reshape(HIDDEN, nh, dh).transpose(1, 0, 2)

    wqkv, wo, wi, wf = [], [], [], []
    for _ in range(N_LAYERS):
        wq = dense(next(keys), HIDDEN, HIDDEN)
        wk = dense(next(keys), HIDDEN, HIDDEN)
        wv = dense(next(keys), HIDDEN, HIDDEN)
        wqkv.append(jnp.concatenate(
            [head_major(wq), head_major(wk), head_major(wv)], axis=0))  # (3nh, H, dh)
        wo.append(dense(next(keys), HIDDEN, HIDDEN).reshape(nh, dh, HIDDEN))
        wi.append(dense(next(keys), HIDDEN, INTERMEDIATE))
        wf.append(dense(next(keys), INTERMEDIATE, HIDDEN))
    L = N_LAYERS
    p.update({
        # matmul weights stored in bf16 (f32 accumulation inside the kernel)
        "wqkv": jnp.stack(wqkv).astype(jnp.bfloat16),
        "bqkv": jnp.zeros((L, 3 * nh, 1, dh), jnp.float32),
        "wo": jnp.stack(wo).astype(jnp.bfloat16),
        "bo": jnp.zeros((L, 1, HIDDEN), jnp.float32),
        "ln1_g": jnp.ones((L, 1, HIDDEN), jnp.float32),
        "ln1_b": jnp.zeros((L, 1, HIDDEN), jnp.float32),
        "wi": jnp.stack(wi).astype(jnp.bfloat16),
        "bi": jnp.zeros((L, 1, INTERMEDIATE), jnp.float32),
        "wf": jnp.stack(wf).astype(jnp.bfloat16),
        "bf": jnp.zeros((L, 1, HIDDEN), jnp.float32),
        "ln2_g": jnp.ones((L, 1, HIDDEN), jnp.float32),
        "ln2_b": jnp.zeros((L, 1, HIDDEN), jnp.float32),
        "cls_w": dense(next(keys), HIDDEN, NUM_LABELS),
        "cls_b": jnp.zeros((NUM_LABELS,), jnp.float32),
    })
    return p


# ------------------------------ forward pass -------------------------------

def bert_forward(params, input_ids, attention_mask, labels):
    B, S = input_ids.shape
    H = HIDDEN

    # embeddings: gather + adds + LayerNorm are memory-bound XLA glue
    we = jnp.take(params["word_emb"], input_ids, axis=0)              # (B, S, H)
    pe = params["pos_emb"][:S][None, :, :]                            # (1, S, H)
    te = params["type_emb"][0][None, None, :]                         # token_type_ids = 0
    emb = (we + pe + te).astype(jnp.float32)
    mean = jnp.mean(emb, axis=-1, keepdims=True)
    var = jnp.mean((emb - mean) ** 2, axis=-1, keepdims=True)
    emb = (emb - mean) * jax.lax.rsqrt(var + LN_EPS)
    emb = emb * params["emb_ln_g"] + params["emb_ln_b"]
    emb = emb.reshape(B * S, H)

    # extended attention mask -> additive key bias (B, 1, S); no per-head copies
    mask_bias = ((1.0 - attention_mask.astype(jnp.float32)) * MASK_NEG
                 ).reshape(B, 1, S)

    hidden = encoder(params, emb, mask_bias)                          # (B*S, H)

    # classifier + cross-entropy in plain XLA (2-wide lane output; per review)
    logits = (hidden @ params["cls_w"] + params["cls_b"]).reshape(B, S, NUM_LABELS)

    flat_logits = logits.reshape(-1, NUM_LABELS)
    flat_labels = labels.reshape(-1)
    logp = jax.nn.log_softmax(flat_logits, axis=-1)
    valid = flat_labels != -100
    safe = jnp.where(valid, flat_labels, 0)
    nll = -jnp.take_along_axis(logp, safe[:, None], axis=-1)[:, 0]
    loss = jnp.sum(jnp.where(valid, nll, 0.0)) / jnp.maximum(jnp.sum(valid), 1)
    return loss, logits


# ---------------------------------- main -----------------------------------

if __name__ == "__main__":
    key = jax.random.PRNGKey(0)
    pkey, ikey, lkey = jax.random.split(key, 3)
    params = init_params(pkey)

    B, S = 2, 8
    input_ids = jax.random.randint(ikey, (B, S), 0, VOCAB, dtype=jnp.int32)
    attention_mask = jnp.ones((B, S), dtype=jnp.int32).at[1, 6:].set(0)
    labels = jax.random.randint(lkey, (B, S), 0, NUM_LABELS, dtype=jnp.int32)

    loss, logits = jax.jit(bert_forward)(params, input_ids, attention_mask, labels)
    jax.block_until_ready((loss, logits))

    assert logits.shape == (B, S, NUM_LABELS)
    assert loss.shape == ()
    print("KERNEL_OK")
</pallas_src>

<mosaic_0001>
module attributes {stable_mosaic.version = 11 : i64} {
  func.func @_encoder_layer_kernel(%arg0: i32, %arg1: i32, %arg2: memref<8x32xf32, #tpu.memory_space<vmem>>, %arg3: memref<1x1x8xf32, #tpu.memory_space<vmem>>, %arg4: memref<1x6x32x16xbf16, #tpu.memory_space<vmem>>, %arg5: memref<1x6x1x16xf32, #tpu.memory_space<vmem>>, %arg6: memref<1x2x16x32xbf16, #tpu.memory_space<vmem>>, %arg7: memref<1x1x32xf32, #tpu.memory_space<vmem>>, %arg8: memref<1x1x32xf32, #tpu.memory_space<vmem>>, %arg9: memref<1x1x32xf32, #tpu.memory_space<vmem>>, %arg10: memref<1x32x64xbf16, #tpu.memory_space<vmem>>, %arg11: memref<1x1x64xf32, #tpu.memory_space<vmem>>, %arg12: memref<1x64x32xbf16, #tpu.memory_space<vmem>>, %arg13: memref<1x1x32xf32, #tpu.memory_space<vmem>>, %arg14: memref<1x1x32xf32, #tpu.memory_space<vmem>>, %arg15: memref<1x1x32xf32, #tpu.memory_space<vmem>>, %arg16: memref<8x32xf32, #tpu.memory_space<vmem>>) attributes {dimension_semantics = [#tpu.dimension_semantics<parallel>, #tpu.dimension_semantics<arbitrary>], iteration_bounds = array<i64: 2, 2>, scalar_prefetch = 0 : i64, scratch_operands = 0 : i64, tpu.core_type = #tpu.core_type<tc>, window_params = [{transform_indices = @transform_0, window_bounds = array<i64: 8, 32>}, {transform_indices = @transform_1, window_bounds = array<i64: 1, 1, 8>}, {transform_indices = @transform_2, window_bounds = array<i64: 1, 6, 32, 16>}, {transform_indices = @transform_3, window_bounds = array<i64: 1, 6, 1, 16>}, {transform_indices = @transform_4, window_bounds = array<i64: 1, 2, 16, 32>}, {transform_indices = @transform_5, window_bounds = array<i64: 1, 1, 32>}, {transform_indices = @transform_6, window_bounds = array<i64: 1, 1, 32>}, {transform_indices = @transform_7, window_bounds = array<i64: 1, 1, 32>}, {transform_indices = @transform_8, window_bounds = array<i64: 1, 32, 64>}, {transform_indices = @transform_9, window_bounds = array<i64: 1, 1, 64>}, {transform_indices = @transform_10, window_bounds = array<i64: 1, 64, 32>}, {transform_indices = @transform_11, window_bounds = array<i64: 1, 1, 32>}, {transform_indices = @transform_12, window_bounds = array<i64: 1, 1, 32>}, {transform_indices = @transform_13, window_bounds = array<i64: 1, 1, 32>}, {transform_indices = @transform_14, window_bounds = array<i64: 8, 32>}]} {
    %c0_i32 = arith.constant 0 : i32
    %0 = arith.cmpi eq, %arg1, %c0_i32 : i32
    %1 = arith.extui %0 : i1 to i32
    %c0_i32_0 = arith.constant 0 : i32
    %2 = arith.cmpi ne, %1, %c0_i32_0 : i32
    scf.if %2 {
      %c0_69 = arith.constant 0 : index
      %c0_70 = arith.constant 0 : index
      %127 = vector.load %arg2[%c0_69, %c0_70] : memref<8x32xf32, #tpu.memory_space<vmem>>, vector<8x32xf32>
      %c0_71 = arith.constant 0 : index
      %c0_72 = arith.constant 0 : index
      %128 = vector.load %arg16[%c0_71, %c0_72] : memref<8x32xf32, #tpu.memory_space<vmem>>, vector<8x32xf32>
      tpu.vector_store %arg16[%c0_71, %c0_72], %127 {strides = array<i32>} : memref<8x32xf32, #tpu.memory_space<vmem>>, vector<8x32xf32>,
    } else {
    }
    %c0 = arith.constant 0 : index
    %c0_1 = arith.constant 0 : index
    %3 = vector.load %arg16[%c0, %c0_1] : memref<8x32xf32, #tpu.memory_space<vmem>>, vector<8x32xf32>
    %4 = arith.truncf %3 : vector<8x32xf32> to vector<8x32xbf16>
    %5 = vector.shape_cast %4 : vector<8x32xbf16> to vector<1x8x32xbf16>
    %6 = vector.broadcast %5 : vector<1x8x32xbf16> to vector<6x8x32xbf16>
    %c0_2 = arith.constant 0 : index
    %c0_3 = arith.constant 0 : index
    %c0_4 = arith.constant 0 : index
    %c0_5 = arith.constant 0 : index
    %7 = vector.load %arg4[%c0_2, %c0_3, %c0_4, %c0_5] : memref<1x6x32x16xbf16, #tpu.memory_space<vmem>>, vector<1x6x32x16xbf16>
    %8 = vector.shape_cast %7 : vector<1x6x32x16xbf16> to vector<6x32x16xbf16>
    "tpu.trace_start"() <{level = 10 : i32, message = "gsh,ghd->gsd"}> : () -> ()
    %cst = arith.constant dense<0.000000e+00> : vector<6x8x16xf32>
    %9 = tpu.matmul %6, %8, %cst {dimension_numbers = #tpu.dot_dimension_numbers<[2], [1], [1], [2], [0, 0, 0, 1, 1, 2], [0], [0]>} : vector<6x8x32xbf16>, vector<6x32x16xbf16>, vector<6x8x16xf32> -> vector<6x8x16xf32>
    "tpu.trace_stop"() : () -> ()
    %c0_6 = arith.constant 0 : index
    %c0_7 = arith.constant 0 : index
    %c0_8 = arith.constant 0 : index
    %c0_9 = arith.constant 0 : index
    %10 = vector.load %arg5[%c0_6, %c0_7, %c0_8, %c0_9] : memref<1x6x1x16xf32, #tpu.memory_space<vmem>>, vector<1x6x1x16xf32>
    %11 = vector.shape_cast %10 : vector<1x6x1x16xf32> to vector<6x1x16xf32>
    %12 = vector.broadcast %11 : vector<6x1x16xf32> to vector<6x8x16xf32>
    %13 = arith.addf %9, %12 : vector<6x8x16xf32>
    %14 = vector.extract_strided_slice %13 {offsets = [0, 0, 0], sizes = [2, 8, 16], strides = [1, 1, 1]} : vector<6x8x16xf32> to vector<2x8x16xf32>
    %cst_10 = arith.constant 2.500000e-01 : f32
    %15 = vector.broadcast %cst_10 : f32 to vector<2x8x16xf32>
    %16 = arith.mulf %14, %15 : vector<2x8x16xf32>
    %17 = arith.truncf %16 : vector<2x8x16xf32> to vector<2x8x16xbf16>
    %18 = vector.extract_strided_slice %13 {offsets = [2, 0, 0], sizes = [2, 8, 16], strides = [1, 1, 1]} : vector<6x8x16xf32> to vector<2x8x16xf32>
    %19 = arith.truncf %18 : vector<2x8x16xf32> to vector<2x8x16xbf16>
    %20 = vector.extract_strided_slice %13 {offsets = [4, 0, 0], sizes = [2, 8, 16], strides = [1, 1, 1]} : vector<6x8x16xf32> to vector<2x8x16xf32>
    %21 = arith.truncf %20 : vector<2x8x16xf32> to vector<2x8x16xbf16>
    "tpu.trace_start"() <{level = 10 : i32, message = "nqd,nkd->nqk"}> : () -> ()
    %cst_11 = arith.constant dense<0.000000e+00> : vector<2x8x8xf32>
    %22 = tpu.matmul %17, %19, %cst_11 {dimension_numbers = #tpu.dot_dimension_numbers<[2], [2], [1], [1], [0, 0, 0, 1, 1, 1], [0], [0]>} : vector<2x8x16xbf16>, vector<2x8x16xbf16>, vector<2x8x8xf32> -> vector<2x8x8xf32>
    "tpu.trace_stop"() : () -> ()
    %c0_12 = arith.constant 0 : index
    %c0_13 = arith.constant 0 : index
    %c0_14 = arith.constant 0 : index
    %23 = vector.load %arg3[%c0_12, %c0_13, %c0_14] : memref<1x1x8xf32, #tpu.memory_space<vmem>>, vector<1x1x8xf32>
    %24 = vector.broadcast %23 : vector<1x1x8xf32> to vector<2x8x8xf32>
    %25 = arith.addf %22, %24 : vector<2x8x8xf32>
    %cst_15 = arith.constant dense<0xFF800000> : vector<2x8xf32>
    %26 = vector.multi_reduction <maximumf>, %25, %cst_15 [2] : vector<2x8x8xf32> to vector<2x8xf32>
    %27 = vector.shape_cast %26 : vector<2x8xf32> to vector<2x8x1xf32>
    %28 = vector.broadcast %27 : vector<2x8x1xf32> to vector<2x8x8xf32>
    %29 = arith.subf %25, %28 : vector<2x8x8xf32>
    %30 = math.exp %29 : vector<2x8x8xf32>
    %cst_16 = arith.constant dense<0.000000e+00> : vector<2x8xf32>
    %31 = vector.multi_reduction <add>, %30, %cst_16 [2] : vector<2x8x8xf32> to vector<2x8xf32>
    %32 = vector.shape_cast %31 : vector<2x8xf32> to vector<2x8x1xf32>
    %33 = tpu.reciprocal %32 {approx = true} : vector<2x8x1xf32> -> vector<2x8x1xf32>
    %34 = vector.broadcast %33 : vector<2x8x1xf32> to vector<2x8x8xf32>
    %35 = arith.mulf %30, %34 : vector<2x8x8xf32>
    %36 = arith.truncf %35 : vector<2x8x8xf32> to vector<2x8x8xbf16>
    "tpu.trace_start"() <{level = 10 : i32, message = "nqk,nkd->nqd"}> : () -> ()
    %cst_17 = arith.constant dense<0.000000e+00> : vector<2x8x16xf32>
    %37 = tpu.matmul %36, %21, %cst_17 {dimension_numbers = #tpu.dot_dimension_numbers<[2], [1], [1], [2], [0, 0, 0, 1, 1, 2], [0], [0]>} : vector<2x8x8xbf16>, vector<2x8x16xbf16>, vector<2x8x16xf32> -> vector<2x8x16xf32>
    "tpu.trace_stop"() : () -> ()
    %38 = arith.truncf %37 : vector<2x8x16xf32> to vector<2x8x16xbf16>
    %c0_18 = arith.constant 0 : index
    %c0_19 = arith.constant 0 : index
    %c0_20 = arith.constant 0 : index
    %c0_21 = arith.constant 0 : index
    %39 = vector.load %arg6[%c0_18, %c0_19, %c0_20, %c0_21] : memref<1x2x16x32xbf16, #tpu.memory_space<vmem>>, vector<1x2x16x32xbf16>
    %40 = vector.shape_cast %39 : vector<1x2x16x32xbf16> to vector<2x16x32xbf16>
    "tpu.trace_start"() <{level = 10 : i32, message = "nsd,ndh->nsh"}> : () -> ()
    %cst_22 = arith.constant dense<0.000000e+00> : vector<2x8x32xf32>
    %41 = tpu.matmul %38, %40, %cst_22 {dimension_numbers = #tpu.dot_dimension_numbers<[2], [1], [1], [2], [0, 0, 0, 1, 1, 2], [0], [0]>} : vector<2x8x16xbf16>, vector<2x16x32xbf16>, vector<2x8x32xf32> -> vector<2x8x32xf32>
    "tpu.trace_stop"() : () -> ()
    %cst_23 = arith.constant dense<0.000000e+00> : vector<8x32xf32>
    %42 = vector.multi_reduction <add>, %41, %cst_23 [0] : vector<2x8x32xf32> to vector<8x32xf32>
    %c0_24 = arith.constant 0 : index
    %c0_25 = arith.constant 0 : index
    %c0_26 = arith.constant 0 : index
    %43 = vector.load %arg7[%c0_24, %c0_25, %c0_26] : memref<1x1x32xf32, #tpu.memory_space<vmem>>, vector<1x1x32xf32>
    %44 = vector.shape_cast %43 : vector<1x1x32xf32> to vector<1x32xf32>
    %45 = vector.broadcast %44 : vector<1x32xf32> to vector<8x32xf32>
    %46 = arith.addf %42, %45 : vector<8x32xf32>
    %47 = arith.addf %46, %3 : vector<8x32xf32>
    %c0_27 = arith.constant 0 : index
    %c0_28 = arith.constant 0 : index
    %c0_29 = arith.constant 0 : index
    %48 = vector.load %arg8[%c0_27, %c0_28, %c0_29] : memref<1x1x32xf32, #tpu.memory_space<vmem>>, vector<1x1x32xf32>
    %49 = vector.shape_cast %48 : vector<1x1x32xf32> to vector<1x32xf32>
    %c0_30 = arith.constant 0 : index
    %c0_31 = arith.constant 0 : index
    %c0_32 = arith.constant 0 : index
    %50 = vector.load %arg9[%c0_30, %c0_31, %c0_32] : memref<1x1x32xf32, #tpu.memory_space<vmem>>, vector<1x1x32xf32>
    %51 = vector.shape_cast %50 : vector<1x1x32xf32> to vector<1x32xf32>
    %cst_33 = arith.constant dense<0.000000e+00> : vector<8xf32>
    %52 = vector.multi_reduction <add>, %47, %cst_33 [1] : vector<8x32xf32> to vector<8xf32>
    %53 = vector.shape_cast %52 : vector<8xf32> to vector<8x1xf32>
    %cst_34 = arith.constant 3.200000e+01 : f32
    %54 = vector.broadcast %cst_34 : f32 to vector<8x1xf32>
    %55 = arith.divf %53, %54 : vector<8x1xf32>
    %56 = vector.broadcast %55 : vector<8x1xf32> to vector<8x32xf32>
    %57 = arith.subf %47, %56 : vector<8x32xf32>
    %58 = arith.mulf %57, %57 : vector<8x32xf32>
    %cst_35 = arith.constant dense<0.000000e+00> : vector<8xf32>
    %59 = vector.multi_reduction <add>, %58, %cst_35 [1] : vector<8x32xf32> to vector<8xf32>
    %60 = vector.shape_cast %59 : vector<8xf32> to vector<8x1xf32>
    %cst_36 = arith.constant 3.200000e+01 : f32
    %61 = vector.broadcast %cst_36 : f32 to vector<8x1xf32>
    %62 = arith.divf %60, %61 : vector<8x1xf32>
    %cst_37 = arith.constant 9.99999996E-13 : f32
    %63 = vector.broadcast %cst_37 : f32 to vector<8x1xf32>
    %64 = arith.addf %62, %63 : vector<8x1xf32>
    %65 = math.rsqrt %64 : vector<8x1xf32>
    %66 = vector.broadcast %65 : vector<8x1xf32> to vector<8x32xf32>
    %67 = arith.mulf %57, %66 : vector<8x32xf32>
    %68 = vector.broadcast %49 : vector<1x32xf32> to vector<8x32xf32>
    %69 = arith.mulf %67, %68 : vector<8x32xf32>
    %70 = vector.broadcast %51 : vector<1x32xf32> to vector<8x32xf32>
    %71 = arith.addf %69, %70 : vector<8x32xf32>
    %72 = arith.truncf %71 : vector<8x32xf32> to vector<8x32xbf16>
    %c0_38 = arith.constant 0 : index
    %c0_39 = arith.constant 0 : index
    %c0_40 = arith.constant 0 : index
    %73 = vector.load %arg10[%c0_38, %c0_39, %c0_40] : memref<1x32x64xbf16, #tpu.memory_space<vmem>>, vector<1x32x64xbf16>
    %74 = vector.shape_cast %73 : vector<1x32x64xbf16> to vector<32x64xbf16>
    %cst_41 = arith.constant dense<0.000000e+00> : vector<8x64xf32>
    %75 = tpu.matmul %72, %74, %cst_41 {dimension_numbers = #tpu.dot_dimension_numbers<[1], [0], [0], [1], [0, 0, 1, 1], [], []>} : vector<8x32xbf16>, vector<32x64xbf16>, vector<8x64xf32> -> vector<8x64xf32>
    %c0_42 = arith.constant 0 : index
    %c0_43 = arith.constant 0 : index
    %c0_44 = arith.constant 0 : index
    %76 = vector.load %arg11[%c0_42, %c0_43, %c0_44] : memref<1x1x64xf32, #tpu.memory_space<vmem>>, vector<1x1x64xf32>
    %77 = vector.shape_cast %76 : vector<1x1x64xf32> to vector<1x64xf32>
    %78 = vector.broadcast %77 : vector<1x64xf32> to vector<8x64xf32>
    %79 = arith.addf %75, %78 : vector<8x64xf32>
    %cst_45 = arith.constant 5.000000e-01 : f32
    %80 = vector.broadcast %cst_45 : f32 to vector<8x64xf32>
    %81 = arith.mulf %80, %79 : vector<8x64xf32>
    %cst_46 = arith.constant 4.471500e-02 : f32
    %82 = vector.broadcast %cst_46 : f32 to vector<8x64xf32>
    %83 = arith.mulf %82, %79 : vector<8x64xf32>
    %84 = arith.mulf %83, %79 : vector<8x64xf32>
    %85 = arith.mulf %84, %79 : vector<8x64xf32>
    %86 = arith.addf %79, %85 : vector<8x64xf32>
    %cst_47 = arith.constant 0.797884583 : f32
    %87 = vector.broadcast %cst_47 : f32 to vector<8x64xf32>
    %88 = arith.mulf %87, %86 : vector<8x64xf32>
    %89 = math.tanh %88 : vector<8x64xf32>
    %cst_48 = arith.constant 1.000000e+00 : f32
    %90 = vector.broadcast %cst_48 : f32 to vector<8x64xf32>
    %91 = arith.addf %90, %89 : vector<8x64xf32>
    %92 = arith.mulf %81, %91 : vector<8x64xf32>
    %93 = arith.truncf %92 : vector<8x64xf32> to vector<8x64xbf16>
    %c0_49 = arith.constant 0 : index
    %c0_50 = arith.constant 0 : index
    %c0_51 = arith.constant 0 : index
    %94 = vector.load %arg12[%c0_49, %c0_50, %c0_51] : memref<1x64x32xbf16, #tpu.memory_space<vmem>>, vector<1x64x32xbf16>
    %95 = vector.shape_cast %94 : vector<1x64x32xbf16> to vector<64x32xbf16>
    %cst_52 = arith.constant dense<0.000000e+00> : vector<8x32xf32>
    %96 = tpu.matmul %93, %95, %cst_52 {dimension_numbers = #tpu.dot_dimension_numbers<[1], [0], [0], [1], [0, 0, 1, 1], [], []>} : vector<8x64xbf16>, vector<64x32xbf16>, vector<8x32xf32> -> vector<8x32xf32>
    %c0_53 = arith.constant 0 : index
    %c0_54 = arith.constant 0 : index
    %c0_55 = arith.constant 0 : index
    %97 = vector.load %arg13[%c0_53, %c0_54, %c0_55] : memref<1x1x32xf32, #tpu.memory_space<vmem>>, vector<1x1x32xf32>
    %98 = vector.shape_cast %97 : vector<1x1x32xf32> to vector<1x32xf32>
    %99 = vector.broadcast %98 : vector<1x32xf32> to vector<8x32xf32>
    %100 = arith.addf %96, %99 : vector<8x32xf32>
    %101 = arith.addf %100, %71 : vector<8x32xf32>
    %c0_56 = arith.constant 0 : index
    %c0_57 = arith.constant 0 : index
    %c0_58 = arith.constant 0 : index
    %102 = vector.load %arg14[%c0_56, %c0_57, %c0_58] : memref<1x1x32xf32, #tpu.memory_space<vmem>>, vector<1x1x32xf32>
    %103 = vector.shape_cast %102 : vector<1x1x32xf32> to vector<1x32xf32>
    %c0_59 = arith.constant 0 : index
    %c0_60 = arith.constant 0 : index
    %c0_61 = arith.constant 0 : index
    %104 = vector.load %arg15[%c0_59, %c0_60, %c0_61] : memref<1x1x32xf32, #tpu.memory_space<vmem>>, vector<1x1x32xf32>
    %105 = vector.shape_cast %104 : vector<1x1x32xf32> to vector<1x32xf32>
    %cst_62 = arith.constant dense<0.000000e+00> : vector<8xf32>
    %106 = vector.multi_reduction <add>, %101, %cst_62 [1] : vector<8x32xf32> to vector<8xf32>
    %107 = vector.shape_cast %106 : vector<8xf32> to vector<8x1xf32>
    %cst_63 = arith.constant 3.200000e+01 : f32
    %108 = vector.broadcast %cst_63 : f32 to vector<8x1xf32>
    %109 = arith.divf %107, %108 : vector<8x1xf32>
    %110 = vector.broadcast %109 : vector<8x1xf32> to vector<8x32xf32>
    %111 = arith.subf %101, %110 : vector<8x32xf32>
    %112 = arith.mulf %111, %111 : vector<8x32xf32>
    %cst_64 = arith.constant dense<0.000000e+00> : vector<8xf32>
    %113 = vector.multi_reduction <add>, %112, %cst_64 [1] : vector<8x32xf32> to vector<8xf32>
    %114 = vector.shape_cast %113 : vector<8xf32> to vector<8x1xf32>
    %cst_65 = arith.constant 3.200000e+01 : f32
    %115 = vector.broadcast %cst_65 : f32 to vector<8x1xf32>
    %116 = arith.divf %114, %115 : vector<8x1xf32>
    %cst_66 = arith.constant 9.99999996E-13 : f32
    %117 = vector.broadcast %cst_66 : f32 to vector<8x1xf32>
    %118 = arith.addf %116, %117 : vector<8x1xf32>
    %119 = math.rsqrt %118 : vector<8x1xf32>
    %120 = vector.broadcast %119 : vector<8x1xf32> to vector<8x32xf32>
    %121 = arith.mulf %111, %120 : vector<8x32xf32>
    %122 = vector.broadcast %103 : vector<1x32xf32> to vector<8x32xf32>
    %123 = arith.mulf %121, %122 : vector<8x32xf32>
    %124 = vector.broadcast %105 : vector<1x32xf32> to vector<8x32xf32>
    %125 = arith.addf %123, %124 : vector<8x32xf32>
    %c0_67 = arith.constant 0 : index
    %c0_68 = arith.constant 0 : index
    %126 = vector.load %arg16[%c0_67, %c0_68] : memref<8x32xf32, #tpu.memory_space<vmem>>, vector<8x32xf32>
    tpu.vector_store %arg16[%c0_67, %c0_68], %125 {strides = array<i32>} : memref<8x32xf32, #tpu.memory_space<vmem>>, vector<8x32xf32>,
    return
  }
  func.func @transform_0(%arg0: i32, %arg1: i32) -> (i32, i32) {
    %c0_i32 = arith.constant 0 : i32
    %c0_i32_0 = arith.constant 0 : i32
    return %arg0, %c0_i32 : i32, i32
  }
  func.func @transform_1(%arg0: i32, %arg1: i32) -> (i32, i32, i32) {
    %c0_i32 = arith.constant 0 : i32
    %c0_i32_0 = arith.constant 0 : i32
    %c0_i32_1 = arith.constant 0 : i32
    return %arg0, %c0_i32, %c0_i32_0 : i32, i32, i32
  }
  func.func @transform_2(%arg0: i32, %arg1: i32) -> (i32, i32, i32, i32) {
    %c0_i32 = arith.constant 0 : i32
    %c0_i32_0 = arith.constant 0 : i32
    %c0_i32_1 = arith.constant 0 : i32
    %c0_i32_2 = arith.constant 0 : i32
    return %arg1, %c0_i32, %c0_i32_0, %c0_i32_1 : i32, i32, i32, i32
  }
  func.func @transform_3(%arg0: i32, %arg1: i32) -> (i32, i32, i32, i32) {
    %c0_i32 = arith.constant 0 : i32
    %c0_i32_0 = arith.constant 0 : i32
    %c0_i32_1 = arith.constant 0 : i32
    %c0_i32_2 = arith.constant 0 : i32
    return %arg1, %c0_i32, %c0_i32_0, %c0_i32_1 : i32, i32, i32, i32
  }
  func.func @transform_4(%arg0: i32, %arg1: i32) -> (i32, i32, i32, i32) {
    %c0_i32 = arith.constant 0 : i32
    %c0_i32_0 = arith.constant 0 : i32
    %c0_i32_1 = arith.constant 0 : i32
    %c0_i32_2 = arith.constant 0 : i32
    return %arg1, %c0_i32, %c0_i32_0, %c0_i32_1 : i32, i32, i32, i32
  }
  func.func @transform_5(%arg0: i32, %arg1: i32) -> (i32, i32, i32) {
    %c0_i32 = arith.constant 0 : i32
    %c0_i32_0 = arith.constant 0 : i32
    %c0_i32_1 = arith.constant 0 : i32
    return %arg1, %c0_i32, %c0_i32_0 : i32, i32, i32
  }
  func.func @transform_6(%arg0: i32, %arg1: i32) -> (i32, i32, i32) {
    %c0_i32 = arith.constant 0 : i32
    %c0_i32_0 = arith.constant 0 : i32
    %c0_i32_1 = arith.constant 0 : i32
    return %arg1, %c0_i32, %c0_i32_0 : i32, i32, i32
  }
  func.func @transform_7(%arg0: i32, %arg1: i32) -> (i32, i32, i32) {
    %c0_i32 = arith.constant 0 : i32
    %c0_i32_0 = arith.constant 0 : i32
    %c0_i32_1 = arith.constant 0 : i32
    return %arg1, %c0_i32, %c0_i32_0 : i32, i32, i32
  }
  func.func @transform_8(%arg0: i32, %arg1: i32) -> (i32, i32, i32) {
    %c0_i32 = arith.constant 0 : i32
    %c0_i32_0 = arith.constant 0 : i32
    %c0_i32_1 = arith.constant 0 : i32
    return %arg1, %c0_i32, %c0_i32_0 : i32, i32, i32
  }
  func.func @transform_9(%arg0: i32, %arg1: i32) -> (i32, i32, i32) {
    %c0_i32 = arith.constant 0 : i32
    %c0_i32_0 = arith.constant 0 : i32
    %c0_i32_1 = arith.constant 0 : i32
    return %arg1, %c0_i32, %c0_i32_0 : i32, i32, i32
  }
  func.func @transform_10(%arg0: i32, %arg1: i32) -> (i32, i32, i32) {
    %c0_i32 = arith.constant 0 : i32
    %c0_i32_0 = arith.constant 0 : i32
    %c0_i32_1 = arith.constant 0 : i32
    return %arg1, %c0_i32, %c0_i32_0 : i32, i32, i32
  }
  func.func @transform_11(%arg0: i32, %arg1: i32) -> (i32, i32, i32) {
    %c0_i32 = arith.constant 0 : i32
    %c0_i32_0 = arith.constant 0 : i32
    %c0_i32_1 = arith.constant 0 : i32
    return %arg1, %c0_i32, %c0_i32_0 : i32, i32, i32
  }
  func.func @transform_12(%arg0: i32, %arg1: i32) -> (i32, i32, i32) {
    %c0_i32 = arith.constant 0 : i32
    %c0_i32_0 = arith.constant 0 : i32
    %c0_i32_1 = arith.constant 0 : i32
    return %arg1, %c0_i32, %c0_i32_0 : i32, i32, i32
  }
  func.func @transform_13(%arg0: i32, %arg1: i32) -> (i32, i32, i32) {
    %c0_i32 = arith.constant 0 : i32
    %c0_i32_0 = arith.constant 0 : i32
    %c0_i32_1 = arith.constant 0 : i32
    return %arg1, %c0_i32, %c0_i32_0 : i32, i32, i32
  }
  func.func @transform_14(%arg0: i32, %arg1: i32) -> (i32, i32) {
    %c0_i32 = arith.constant 0 : i32
    %c0_i32_0 = arith.constant 0 : i32
    return %arg0, %c0_i32 : i32, i32
  }
}

</mosaic_0001>

<llo_original>
// kernel: bert_forward.1
$region0: #{bert_forward.1}
  #allocation0 [shape = 'u32[]', space=smem, size = 0x4, offset = 0x4, fixed_abs, tag = 'smem constant byte address 0x4 - core index']
  #allocation1 [shape = 'u32[144,128]{1,0:T(1,128)}', space=vmem, size = 0x12000, scoped, tag = 'internal scratch']
  %s0 = inlined_call_operand.vmem [shape: f32[16,32], index: 0, kind: input, shape index: {}]
  %s1 = inlined_call_operand.vmem [shape: f32[2,1,8], index: 1, kind: input, shape index: {}]
  %s2 = inlined_call_operand.vmem [shape: bf16[2,6,32,16], index: 2, kind: input, shape index: {}]
  %s3 = inlined_call_operand.vmem [shape: f32[2,6,1,16], index: 3, kind: input, shape index: {}]
  %s4 = inlined_call_operand.vmem [shape: bf16[2,2,16,32], index: 4, kind: input, shape index: {}]
  %s5 = inlined_call_operand.vmem [shape: f32[2,1,32], index: 5, kind: input, shape index: {}]
  %s6 = inlined_call_operand.vmem [shape: f32[2,1,32], index: 6, kind: input, shape index: {}]
  %s7 = inlined_call_operand.vmem [shape: f32[2,1,32], index: 7, kind: input, shape index: {}]
  %s8 = inlined_call_operand.vmem [shape: bf16[2,32,64], index: 8, kind: input, shape index: {}]
  %s9 = inlined_call_operand.vmem [shape: f32[2,1,64], index: 9, kind: input, shape index: {}]
  %s10 = inlined_call_operand.vmem [shape: bf16[2,64,32], index: 10, kind: input, shape index: {}]
  %s11 = inlined_call_operand.vmem [shape: f32[2,1,32], index: 11, kind: input, shape index: {}]
  %s12 = inlined_call_operand.vmem [shape: f32[2,1,32], index: 12, kind: input, shape index: {}]
  %s13 = inlined_call_operand.vmem [shape: f32[2,1,32], index: 13, kind: input, shape index: {}]
  %s14 = inlined_call_operand.vmem [shape: f32[16,32], index: 14, kind: output, shape index: {}]
  %s15 = sld [smem:[#allocation0]]
  $region93: #{bert_forward.1} parent=0
    _
  %s17 = ssub.s32 1, %s15
  %s18 = scalar_select 0, %s17, %s15
  loop: start=0, step=1, limit=6
  $region2: #{bert_forward.1} parent=0 // loop_pre_header
    _
  $region3: #{bert_forward.1} parent=0 // loop_header
    %s20 = sphi 0, %s24
    %p21 = scmp.ge.s32.totalorder %s20, 6
    %s27 = sphi 0, %s39
    %s28 = sphi 0, %s35
    %s29 = sphi 0, %s27
    %s30 = sphi 0, %s28
    %s31 = sphi 0, %s29
    %s32 = sphi 0, %s30
    %s42 = sphi 0, %s44
    %s45 = sphi 0, %s42
    %s46 = sphi 0, %s45
    %s62 = sphi 0, %s46
    %s68 = sphi 0, %s70
    %s71 = sphi 0, %s68
    %s72 = sphi 0, %s71
    %s88 = sphi 0, %s72
    %s94 = sphi 0, %s96
    %s97 = sphi 0, %s94
    %s98 = sphi 0, %s97
    %s114 = sphi 0, %s98
    %s120 = sphi 0, %s122
    %s123 = sphi 0, %s120
    %s124 = sphi 0, %s123
    %s140 = sphi 0, %s124
    %s146 = sphi 0, %s148
    %s149 = sphi 0, %s146
    %s150 = sphi 0, %s149
    %s166 = sphi 0, %s150
    %s172 = sphi 0, %s174
    %s175 = sphi 0, %s172
    %s176 = sphi 0, %s175
    %s192 = sphi 0, %s176
    %s198 = sphi 0, %s200
    %s201 = sphi 0, %s198
    %s202 = sphi 0, %s201
    %s218 = sphi 0, %s202
    %s224 = sphi 0, %s226
    %s227 = sphi 0, %s224
    %s228 = sphi 0, %s227
    %s244 = sphi 0, %s228
    %s250 = sphi 0, %s252
    %s253 = sphi 0, %s250
    %s254 = sphi 0, %s253
    %s270 = sphi 0, %s254
    %s276 = sphi 0, %s278
    %s279 = sphi 0, %s276
    %s280 = sphi 0, %s279
    %s296 = sphi 0, %s280
    %s302 = sphi 0, %s304
    %s305 = sphi 0, %s302
    %s306 = sphi 0, %s305
    %s322 = sphi 0, %s306
    %s328 = sphi 0, %s330
    %s331 = sphi 0, %s328
    %s332 = sphi 0, %s331
    %s348 = sphi 0, %s332
    %s354 = sphi 0, %s356
    %s357 = sphi 0, %s354
    %s358 = sphi 0, %s357
    %s374 = sphi 0, %s358
    %s380 = sphi 0, %s382
    %s383 = sphi 0, %s380
    %s384 = sphi 0, %s383
    %s400 = sphi 0, %s384
    %s406 = sphi 0, %s408
    %s409 = sphi 0, %s406
    %s410 = sphi 0, %s409
    %s426 = sphi 0, %s410
  $region4: #{bert_forward.1} parent=0 // loop_header_branch
    %23 = sbr.rel (%p21) target = $region8
  $region5: #{bert_forward.1} parent=0 // loop_body
    %s25 = ssub.s32 %s20, 1
    %s26 = ssub.s32 %s20, 2
    %s33 = sadd.s32 1, %s28
    %p34 = scmp.ge.s32.totalorder %s33, 2
    %s35 = scalar_select %p34, 0, %s33
    %s36 = sadd.s32 1, %s27
    %s37 = scalar_select %p34, %s36, %s27
    %p38 = scmp.ge.s32.totalorder %s37, 2
    %s39 = scalar_select %p38, 0, %s37
    %s40 = ssub.s32 %s27, %s39
    %p41 = scmp.eq.s32.totalorder %s40, 0
    %s43 = sadd.s32 %s42, 1
    %s44 = scalar_select %p41, %s42, %s43
    %p47 = pneg %p41
    %p48 = scmp.eq.s32.totalorder %s20, 3
    %p49 = por %p47, %p48
    %p50 = scmp.ne.s32.totalorder %s42, %s45
    %p51 = scmp.eq.s32.totalorder %s20, 0
    %p52 = por %p50, %p51
    %p53 = scmp.ne.s32.totalorder %s42, %s45
    %p54 = scmp.eq.s32.totalorder %s25, 3
    %p55 = por %p53, %p54
    %p56 = scmp.ne.s32.totalorder %s45, %s46
    %p57 = scmp.eq.s32.totalorder %s25, 0
    %p58 = por %p56, %p57
    %p59 = scmp.ne.s32.totalorder %s45, %s46
    %p60 = scmp.eq.s32.totalorder %s26, 3
    %p61 = por %p59, %p60
    %p63 = scmp.ne.s32.totalorder %s46, %s62
    %p64 = scmp.eq.s32.totalorder %s26, 0
    %p65 = por %p63, %p64
    %s66 = ssub.s32 %s27, %s39
    %p67 = scmp.eq.s32.totalorder %s66, 0
    %s69 = sadd.s32 %s68, 1
    %s70 = scalar_select %p67, %s68, %s69
    %p73 = pneg %p67
    %p74 = scmp.eq.s32.totalorder %s20, 3
    %p75 = por %p73, %p74
    %p76 = scmp.ne.s32.totalorder %s68, %s71
    %p77 = scmp.eq.s32.totalorder %s20, 0
    %p78 = por %p76, %p77
    %p79 = scmp.ne.s32.totalorder %s68, %s71
    %p80 = scmp.eq.s32.totalorder %s25, 3
    %p81 = por %p79, %p80
    %p82 = scmp.ne.s32.totalorder %s71, %s72
    %p83 = scmp.eq.s32.totalorder %s25, 0
    %p84 = por %p82, %p83
    %p85 = scmp.ne.s32.totalorder %s71, %s72
    %p86 = scmp.eq.s32.totalorder %s26, 3
    %p87 = por %p85, %p86
    %p89 = scmp.ne.s32.totalorder %s72, %s88
    %p90 = scmp.eq.s32.totalorder %s26, 0
    %p91 = por %p89, %p90
    %s92 = ssub.s32 %s28, %s35
    %p93 = scmp.eq.s32.totalorder %s92, 0
    %s95 = sadd.s32 %s94, 1
    %s96 = scalar_select %p93, %s94, %s95
    %p99 = pneg %p93
    %p100 = scmp.eq.s32.totalorder %s20, 3
    %p101 = por %p99, %p100
    %p102 = scmp.ne.s32.totalorder %s94, %s97
    %p103 = scmp.eq.s32.totalorder %s20, 0
    %p104 = por %p102, %p103
    %p105 = scmp.ne.s32.totalorder %s94, %s97
    %p106 = scmp.eq.s32.totalorder %s25, 3
    %p107 = por %p105, %p106
    %p108 = scmp.ne.s32.totalorder %s97, %s98
    %p109 = scmp.eq.s32.totalorder %s25, 0
    %p110 = por %p108, %p109
    %p111 = scmp.ne.s32.totalorder %s97, %s98
    %p112 = scmp.eq.s32.totalorder %s26, 3
    %p113 = por %p111, %p112
    %p115 = scmp.ne.s32.totalorder %s98, %s114
    %p116 = scmp.eq.s32.totalorder %s26, 0
    %p117 = por %p115, %p116
    %s118 = ssub.s32 %s28, %s35
    %p119 = scmp.eq.s32.totalorder %s118, 0
    %s121 = sadd.s32 %s120, 1
    %s122 = scalar_select %p119, %s120, %s121
    %p125 = pneg %p119
    %p126 = scmp.eq.s32.totalorder %s20, 3
    %p127 = por %p125, %p126
    %p128 = scmp.ne.s32.totalorder %s120, %s123
    %p129 = scmp.eq.s32.totalorder %s20, 0
    %p130 = por %p128, %p129
    %p131 = scmp.ne.s32.totalorder %s120, %s123
    %p132 = scmp.eq.s32.totalorder %s25, 3
    %p133 = por %p131, %p132
    %p134 = scmp.ne.s32.totalorder %s123, %s124
    %p135 = scmp.eq.s32.totalorder %s25, 0
    %p136 = por %p134, %p135
    %p137 = scmp.ne.s32.totalorder %s123, %s124
    %p138 = scmp.eq.s32.totalorder %s26, 3
    %p139 = por %p137, %p138
    %p141 = scmp.ne.s32.totalorder %s124, %s140
    %p142 = scmp.eq.s32.totalorder %s26, 0
    %p143 = por %p141, %p142
    %s144 = ssub.s32 %s28, %s35
    %p145 = scmp.eq.s32.totalorder %s144, 0
    %s147 = sadd.s32 %s146, 1
    %s148 = scalar_select %p145, %s146, %s147
    %p151 = pneg %p145
    %p152 = scmp.eq.s32.totalorder %s20, 3
    %p153 = por %p151, %p152
    %p154 = scmp.ne.s32.totalorder %s146, %s149
    %p155 = scmp.eq.s32.totalorder %s20, 0
    %p156 = por %p154, %p155
    %p157 = scmp.ne.s32.totalorder %s146, %s149
    %p158 = scmp.eq.s32.totalorder %s25, 3
    %p159 = por %p157, %p158
    %p160 = scmp.ne.s32.totalorder %s149, %s150
    %p161 = scmp.eq.s32.totalorder %s25, 0
    %p162 = por %p160, %p161
    %p163 = scmp.ne.s32.totalorder %s149, %s150
    %p164 = scmp.eq.s32.totalorder %s26, 3
    %p165 = por %p163, %p164
    %p167 = scmp.ne.s32.totalorder %s150, %s166
    %p168 = scmp.eq.s32.totalorder %s26, 0
    %p169 = por %p167, %p168
    %s170 = ssub.s32 %s28, %s35
    %p171 = scmp.eq.s32.totalorder %s170, 0
    %s173 = sadd.s32 %s172, 1
    %s174 = scalar_select %p171, %s172, %s173
    %p177 = pneg %p171
    %p178 = scmp.eq.s32.totalorder %s20, 3
    %p179 = por %p177, %p178
    %p180 = scmp.ne.s32.totalorder %s172, %s175
    %p181 = scmp.eq.s32.totalorder %s20, 0
    %p182 = por %p180, %p181
    %p183 = scmp.ne.s32.totalorder %s172, %s175
    %p184 = scmp.eq.s32.totalorder %s25, 3
    %p185 = por %p183, %p184
    %p186 = scmp.ne.s32.totalorder %s175, %s176
    %p187 = scmp.eq.s32.totalorder %s25, 0
    %p188 = por %p186, %p187
    %p189 = scmp.ne.s32.totalorder %s175, %s176
    %p190 = scmp.eq.s32.totalorder %s26, 3
    %p191 = por %p189, %p190
    %p193 = scmp.ne.s32.totalorder %s176, %s192
    %p194 = scmp.eq.s32.totalorder %s26, 0
    %p195 = por %p193, %p194
    %s196 = ssub.s32 %s28, %s35
    %p197 = scmp.eq.s32.totalorder %s196, 0
    %s199 = sadd.s32 %s198, 1
    %s200 = scalar_select %p197, %s198, %s199
    %p203 = pneg %p197
    %p204 = scmp.eq.s32.totalorder %s20, 3
    %p205 = por %p203, %p204
    %p206 = scmp.ne.s32.totalorder %s198, %s201
    %p207 = scmp.eq.s32.totalorder %s20, 0
    %p208 = por %p206, %p207
    %p209 = scmp.ne.s32.totalorder %s198, %s201
    %p210 = scmp.eq.s32.totalorder %s25, 3
    %p211 = por %p209, %p210
    %p212 = scmp.ne.s32.totalorder %s201, %s202
    %p213 = scmp.eq.s32.totalorder %s25, 0
    %p214 = por %p212, %p213
    %p215 = scmp.ne.s32.totalorder %s201, %s202
    %p216 = scmp.eq.s32.totalorder %s26, 3
    %p217 = por %p215, %p216
    %p219 = scmp.ne.s32.totalorder %s202, %s218
    %p220 = scmp.eq.s32.totalorder %s26, 0
    %p221 = por %p219, %p220
    %s222 = ssub.s32 %s28, %s35
    %p223 = scmp.eq.s32.totalorder %s222, 0
    %s225 = sadd.s32 %s224, 1
    %s226 = scalar_select %p223, %s224, %s225
    %p229 = pneg %p223
    %p230 = scmp.eq.s32.totalorder %s20, 3
    %p231 = por %p229, %p230
    %p232 = scmp.ne.s32.totalorder %s224, %s227
    %p233 = scmp.eq.s32.totalorder %s20, 0
    %p234 = por %p232, %p233
    %p235 = scmp.ne.s32.totalorder %s224, %s227
    %p236 = scmp.eq.s32.totalorder %s25, 3
    %p237 = por %p235, %p236
    %p238 = scmp.ne.s32.totalorder %s227, %s228
    %p239 = scmp.eq.s32.totalorder %s25, 0
    %p240 = por %p238, %p239
    %p241 = scmp.ne.s32.totalorder %s227, %s228
    %p242 = scmp.eq.s32.totalorder %s26, 3
    %p243 = por %p241, %p242
    %p245 = scmp.ne.s32.totalorder %s228, %s244
    %p246 = scmp.eq.s32.totalorder %s26, 0
    %p247 = por %p245, %p246
    %s248 = ssub.s32 %s28, %s35
    %p249 = scmp.eq.s32.totalorder %s248, 0
    %s251 = sadd.s32 %s250, 1
    %s252 = scalar_select %p249, %s250, %s251
    %p255 = pneg %p249
    %p256 = scmp.eq.s32.totalorder %s20, 3
    %p257 = por %p255, %p256
    %p258 = scmp.ne.s32.totalorder %s250, %s253
    %p259 = scmp.eq.s32.totalorder %s20, 0
    %p260 = por %p258, %p259
    %p261 = scmp.ne.s32.totalorder %s250, %s253
    %p262 = scmp.eq.s32.totalorder %s25, 3
    %p263 = por %p261, %p262
    %p264 = scmp.ne.s32.totalorder %s253, %s254
    %p265 = scmp.eq.s32.totalorder %s25, 0
    %p266 = por %p264, %p265
    %p267 = scmp.ne.s32.totalorder %s253, %s254
    %p268 = scmp.eq.s32.totalorder %s26, 3
    %p269 = por %p267, %p268
    %p271 = scmp.ne.s32.totalorder %s254, %s270
    %p272 = scmp.eq.s32.totalorder %s26, 0
    %p273 = por %p271, %p272
    %s274 = ssub.s32 %s28, %s35
    %p275 = scmp.eq.s32.totalorder %s274, 0
    %s277 = sadd.s32 %s276, 1
    %s278 = scalar_select %p275, %s276, %s277
    %p281 = pneg %p275
    %p282 = scmp.eq.s32.totalorder %s20, 3
    %p283 = por %p281, %p282
    %p284 = scmp.ne.s32.totalorder %s276, %s279
    %p285 = scmp.eq.s32.totalorder %s20, 0
    %p286 = por %p284, %p285
    %p287 = scmp.ne.s32.totalorder %s276, %s279
    %p288 = scmp.eq.s32.totalorder %s25, 3
    %p289 = por %p287, %p288
    %p290 = scmp.ne.s32.totalorder %s279, %s280
    %p291 = scmp.eq.s32.totalorder %s25, 0
    %p292 = por %p290, %p291
    %p293 = scmp.ne.s32.totalorder %s279, %s280
    %p294 = scmp.eq.s32.totalorder %s26, 3
    %p295 = por %p293, %p294
    %p297 = scmp.ne.s32.totalorder %s280, %s296
    %p298 = scmp.eq.s32.totalorder %s26, 0
    %p299 = por %p297, %p298
    %s300 = ssub.s32 %s28, %s35
    %p301 = scmp.eq.s32.totalorder %s300, 0
    %s303 = sadd.s32 %s302, 1
    %s304 = scalar_select %p301, %s302, %s303
    %p307 = pneg %p301
    %p308 = scmp.eq.s32.totalorder %s20, 3
    %p309 = por %p307, %p308
    %p310 = scmp.ne.s32.totalorder %s302, %s305
    %p311 = scmp.eq.s32.totalorder %s20, 0
    %p312 = por %p310, %p311
    %p313 = scmp.ne.s32.totalorder %s302, %s305
    %p314 = scmp.eq.s32.totalorder %s25, 3
    %p315 = por %p313, %p314
    %p316 = scmp.ne.s32.totalorder %s305, %s306
    %p317 = scmp.eq.s32.totalorder %s25, 0
    %p318 = por %p316, %p317
    %p319 = scmp.ne.s32.totalorder %s305, %s306
    %p320 = scmp.eq.s32.totalorder %s26, 3
    %p321 = por %p319, %p320
    %p323 = scmp.ne.s32.totalorder %s306, %s322
    %p324 = scmp.eq.s32.totalorder %s26, 0
    %p325 = por %p323, %p324
    %s326 = ssub.s32 %s28, %s35
    %p327 = scmp.eq.s32.totalorder %s326, 0
    %s329 = sadd.s32 %s328, 1
    %s330 = scalar_select %p327, %s328, %s329
    %p333 = pneg %p327
    %p334 = scmp.eq.s32.totalorder %s20, 3
    %p335 = por %p333, %p334
    %p336 = scmp.ne.s32.totalorder %s328, %s331
    %p337 = scmp.eq.s32.totalorder %s20, 0
    %p338 = por %p336, %p337
    %p339 = scmp.ne.s32.totalorder %s328, %s331
    %p340 = scmp.eq.s32.totalorder %s25, 3
    %p341 = por %p339, %p340
    %p342 = scmp.ne.s32.totalorder %s331, %s332
    %p343 = scmp.eq.s32.totalorder %s25, 0
    %p344 = por %p342, %p343
    %p345 = scmp.ne.s32.totalorder %s331, %s332
    %p346 = scmp.eq.s32.totalorder %s26, 3
    %p347 = por %p345, %p346
    %p349 = scmp.ne.s32.totalorder %s332, %s348
    %p350 = scmp.eq.s32.totalorder %s26, 0
    %p351 = por %p349, %p350
    %s352 = ssub.s32 %s28, %s35
    %p353 = scmp.eq.s32.totalorder %s352, 0
    %s355 = sadd.s32 %s354, 1
    %s356 = scalar_select %p353, %s354, %s355
    %p359 = pneg %p353
    %p360 = scmp.eq.s32.totalorder %s20, 3
    %p361 = por %p359, %p360
    %p362 = scmp.ne.s32.totalorder %s354, %s357
    %p363 = scmp.eq.s32.totalorder %s20, 0
    %p364 = por %p362, %p363
    %p365 = scmp.ne.s32.totalorder %s354, %s357
    %p366 = scmp.eq.s32.totalorder %s25, 3
    %p367 = por %p365, %p366
    %p368 = scmp.ne.s32.totalorder %s357, %s358
    %p369 = scmp.eq.s32.totalorder %s25, 0
    %p370 = por %p368, %p369
    %p371 = scmp.ne.s32.totalorder %s357, %s358
    %p372 = scmp.eq.s32.totalorder %s26, 3
    %p373 = por %p371, %p372
    %p375 = scmp.ne.s32.totalorder %s358, %s374
    %p376 = scmp.eq.s32.totalorder %s26, 0
    %p377 = por %p375, %p376
    %s378 = ssub.s32 %s28, %s35
    %p379 = scmp.eq.s32.totalorder %s378, 0
    %s381 = sadd.s32 %s380, 1
    %s382 = scalar_select %p379, %s380, %s381
    %p385 = pneg %p379
    %p386 = scmp.eq.s32.totalorder %s20, 3
    %p387 = por %p385, %p386
    %p388 = scmp.ne.s32.totalorder %s380, %s383
    %p389 = scmp.eq.s32.totalorder %s20, 0
    %p390 = por %p388, %p389
    %p391 = scmp.ne.s32.totalorder %s380, %s383
    %p392 = scmp.eq.s32.totalorder %s25, 3
    %p393 = por %p391, %p392
    %p394 = scmp.ne.s32.totalorder %s383, %s384
    %p395 = scmp.eq.s32.totalorder %s25, 0
    %p396 = por %p394, %p395
    %p397 = scmp.ne.s32.totalorder %s383, %s384
    %p398 = scmp.eq.s32.totalorder %s26, 3
    %p399 = por %p397, %p398
    %p401 = scmp.ne.s32.totalorder %s384, %s400
    %p402 = scmp.eq.s32.totalorder %s26, 0
    %p403 = por %p401, %p402
    %s404 = ssub.s32 %s27, %s39
    %p405 = scmp.eq.s32.totalorder %s404, 0
    %s407 = sadd.s32 %s406, 1
    %s408 = scalar_select %p405, %s406, %s407
    %p411 = pneg %p405
    %p412 = scmp.eq.s32.totalorder %s20, 3
    %p413 = por %p411, %p412
    %p414 = scmp.ne.s32.totalorder %s406, %s409
    %p415 = scmp.eq.s32.totalorder %s20, 0
    %p416 = por %p414, %p415
    %p417 = scmp.ne.s32.totalorder %s406, %s409
    %p418 = scmp.eq.s32.totalorder %s25, 3
    %p419 = por %p417, %p418
    %p420 = scmp.ne.s32.totalorder %s409, %s410
    %p421 = scmp.eq.s32.totalorder %s25, 0
    %p422 = por %p420, %p421
    %p423 = scmp.ne.s32.totalorder %s409, %s410
    %p424 = scmp.eq.s32.totalorder %s26, 3
    %p425 = por %p423, %p424
    %p427 = scmp.ne.s32.totalorder %s410, %s426
    %p428 = scmp.eq.s32.totalorder %s26, 0
    %p429 = por %p427, %p428
    %p430 = scmp.le.s32.totalorder 1, %s20
    %p431 = scmp.lt.s32.totalorder %s20, 5
    %p432 = pnand %p430, %p431
    %p433 = pneg %p432
    // Predicated region
    $region9: #{bert_forward.1} parent=5 // pred_check
      _
    $region10: #{bert_forward.1} parent=5 // pred_check_branch
      %435 = sbr.rel (%p432) target = $region12
    $region11: #{bert_forward.1} parent=5 // pred_region
      %s436 = ssub.s32 %s20, 1
    $region12: #{bert_forward.1} parent=5 // pred_fallthru
      _
    %p437 = scmp.lt.s32.totalorder %s20, 4
    // Predicated region
    $region13: #{bert_forward.1} parent=5 // pred_check
      %p438 = pneg %p437
    $region14: #{bert_forward.1} parent=5 // pred_check_branch
      %440 = sbr.rel (%p438) target = $region16
    $region15: #{bert_forward.1} parent=5 // pred_region
      // Predicated region
      $region17: #{bert_forward.1} parent=15 // pred_check
        %p441 = pneg %p52
      $region18: #{bert_forward.1} parent=15 // pred_check_branch
        %443 = sbr.rel (%p441) target = $region20
      $region19: #{bert_forward.1} parent=15 // pred_region
        %p444 = scmp.lt.s32.totalorder %s27, 1
        %s445 = scalar_select %p444, %s27, 1
        %s446 = smul.addr %s445, 8
        %s447 = scalar_lea.vmem %s0, %s446
      $region20: #{bert_forward.1} parent=15 // pred_fallthru
        _
      // Predicated region
      $region21: #{bert_forward.1} parent=15 // pred_check
        %p448 = pneg %p78
      $region22: #{bert_forward.1} parent=15 // pred_check_branch
        %450 = sbr.rel (%p448) target = $region24
      $region23: #{bert_forward.1} parent=15 // pred_region
        %p451 = scmp.lt.s32.totalorder %s27, 1
        %s452 = scalar_select %p451, %s27, 1
        %s453 = scalar_lea.vmem %s1, %s452
      $region24: #{bert_forward.1} parent=15 // pred_fallthru
        _
      // Predicated region
      $region25: #{bert_forward.1} parent=15 // pred_check
        %p454 = pneg %p104
      $region26: #{bert_forward.1} parent=15 // pred_check_branch
        %456 = sbr.rel (%p454) target = $region28
      $region27: #{bert_forward.1} parent=15 // pred_region
        %p457 = scmp.lt.s32.totalorder %s28, 1
        %s458 = scalar_select %p457, %s28, 1
        %s459 = smul.addr %s458, 24
        %s460 = smul.addr %s459, 4
        %s461 = scalar_lea.vmem %s2, %s460
      $region28: #{bert_forward.1} parent=15 // pred_fallthru
        _
      // Predicated region
      $region29: #{bert_forward.1} parent=15 // pred_check
        %p462 = pneg %p130
      $region30: #{bert_forward.1} parent=15 // pred_check_branch
        %464 = sbr.rel (%p462) target = $region32
      $region31: #{bert_forward.1} parent=15 // pred_region
        %p465 = scmp.lt.s32.totalorder %s28, 1
        %s466 = scalar_select %p465, %s28, 1
        %s467 = smul.addr %s466, 6
        %s468 = scalar_lea.vmem %s3, %s467
      $region32: #{bert_forward.1} parent=15 // pred_fallthru
        _
      // Predicated region
      $region33: #{bert_forward.1} parent=15 // pred_check
        %p469 = pneg %p156
      $region34: #{bert_forward.1} parent=15 // pred_check_branch
        %471 = sbr.rel (%p469) target = $region36
      $region35: #{bert_forward.1} parent=15 // pred_region
        %p472 = scmp.lt.s32.totalorder %s28, 1
        %s473 = scalar_select %p472, %s28, 1
        %s474 = smul.addr %s473, 4
        %s475 = smul.addr %s474, 4
        %s476 = scalar_lea.vmem %s4, %s475
      $region36: #{bert_forward.1} parent=15 // pred_fallthru
        _
      // Predicated region
      $region37: #{bert_forward.1} parent=15 // pred_check
        %p477 = pneg %p182
      $region38: #{bert_forward.1} parent=15 // pred_check_branch
        %479 = sbr.rel (%p477) target = $region40
      $region39: #{bert_forward.1} parent=15 // pred_region
        %p480 = scmp.lt.s32.totalorder %s28, 1
        %s481 = scalar_select %p480, %s28, 1
        %s482 = scalar_lea.vmem %s5, %s481
      $region40: #{bert_forward.1} parent=15 // pred_fallthru
        _
      // Predicated region
      $region41: #{bert_forward.1} parent=15 // pred_check
        %p483 = pneg %p208
      $region42: #{bert_forward.1} parent=15 // pred_check_branch
        %485 = sbr.rel (%p483) target = $region44
      $region43: #{bert_forward.1} parent=15 // pred_region
        %p486 = scmp.lt.s32.totalorder %s28, 1
        %s487 = scalar_select %p486, %s28, 1
        %s488 = scalar_lea.vmem %s6, %s487
      $region44: #{bert_forward.1} parent=15 // pred_fallthru
        _
      // Predicated region
      $region45: #{bert_forward.1} parent=15 // pred_check
        %p489 = pneg %p234
      $region46: #{bert_forward.1} parent=15 // pred_check_branch
        %491 = sbr.rel (%p489) target = $region48
      $region47: #{bert_forward.1} parent=15 // pred_region
        %p492 = scmp.lt.s32.totalorder %s28, 1
        %s493 = scalar_select %p492, %s28, 1
        %s494 = scalar_lea.vmem %s7, %s493
      $region48: #{bert_forward.1} parent=15 // pred_fallthru
        _
      // Predicated region
      $region49: #{bert_forward.1} parent=15 // pred_check
        %p495 = pneg %p260
      $region50: #{bert_forward.1} parent=15 // pred_check_branch
        %497 = sbr.rel (%p495) target = $region52
      $region51: #{bert_forward.1} parent=15 // pred_region
        %p498 = scmp.lt.s32.totalorder %s28, 1
        %s499 = scalar_select %p498, %s28, 1
        %s500 = smul.addr %s499, 4
        %s501 = smul.addr %s500, 4
        %s502 = scalar_lea.vmem %s8, %s501
      $region52: #{bert_forward.1} parent=15 // pred_fallthru
        _
      // Predicated region
      $region53: #{bert_forward.1} parent=15 // pred_check
        %p503 = pneg %p286
      $region54: #{bert_forward.1} parent=15 // pred_check_branch
        %505 = sbr.rel (%p503) target = $region56
      $region55: #{bert_forward.1} parent=15 // pred_region
        %p506 = scmp.lt.s32.totalorder %s28, 1
        %s507 = scalar_select %p506, %s28, 1
        %s508 = scalar_lea.vmem %s9, %s507
      $region56: #{bert_forward.1} parent=15 // pred_fallthru
        _
      // Predicated region
      $region57: #{bert_forward.1} parent=15 // pred_check
        %p509 = pneg %p312
      $region58: #{bert_forward.1} parent=15 // pred_check_branch
        %511 = sbr.rel (%p509) target = $region60
      $region59: #{bert_forward.1} parent=15 // pred_region
        %p512 = scmp.lt.s32.totalorder %s28, 1
        %s513 = scalar_select %p512, %s28, 1
        %s514 = smul.addr %s513, 8
        %s515 = smul.addr %s514, 4
        %s516 = scalar_lea.vmem %s10, %s515
      $region60: #{bert_forward.1} parent=15 // pred_fallthru
        _
      // Predicated region
      $region61: #{bert_forward.1} parent=15 // pred_check
        %p517 = pneg %p338
      $region62: #{bert_forward.1} parent=15 // pred_check_branch
        %519 = sbr.rel (%p517) target = $region64
      $region63: #{bert_forward.1} parent=15 // pred_region
        %p520 = scmp.lt.s32.totalorder %s28, 1
        %s521 = scalar_select %p520, %s28, 1
        %s522 = scalar_lea.vmem %s11, %s521
      $region64: #{bert_forward.1} parent=15 // pred_fallthru
        _
      // Predicated region
      $region65: #{bert_forward.1} parent=15 // pred_check
        %p523 = pneg %p364
      $region66: #{bert_forward.1} parent=15 // pred_check_branch
        %525 = sbr.rel (%p523) target = $region68
      $region67: #{bert_forward.1} parent=15 // pred_region
        %p526 = scmp.lt.s32.totalorder %s28, 1
        %s527 = scalar_select %p526, %s28, 1
        %s528 = scalar_lea.vmem %s12, %s527
      $region68: #{bert_forward.1} parent=15 // pred_fallthru
        _
      // Predicated region
      $region69: #{bert_forward.1} parent=15 // pred_check
        %p529 = pneg %p390
      $region70: #{bert_forward.1} parent=15 // pred_check_branch
        %531 = sbr.rel (%p529) target = $region72
      $region71: #{bert_forward.1} parent=15 // pred_region
        %p532 = scmp.lt.s32.totalorder %s28, 1
        %s533 = scalar_select %p532, %s28, 1
        %s534 = scalar_lea.vmem %s13, %s533
      $region72: #{bert_forward.1} parent=15 // pred_fallthru
        _
    $region16: #{bert_forward.1} parent=5 // pred_fallthru
      _
    %p535 = scmp.le.s32.totalorder 1, %s20
    %p536 = scmp.lt.s32.totalorder %s20, 5
    %p537 = pnand %p535, %p536
    %p538 = pneg %p537
    // Predicated region
    $region73: #{bert_forward.1} parent=5 // pred_check
      _
    $region74: #{bert_forward.1} parent=5 // pred_check_branch
      %540 = sbr.rel (%p537) target = $region76
    $region75: #{bert_forward.1} parent=5 // pred_region
      %s541 = ssub.s32 %s20, 1
      %p542 = scmp.lt.s32.totalorder %s29, 1
      %s543 = scalar_select %p542, %s29, 1
      %s544 = smul.addr %s543, 8
      %s545 = scalar_lea.vmem %s0, %s544
      %p546 = pneg %p58
      %p547 = pneg %p55
      %p548 = scmp.lt.s32.totalorder %s29, 1
      %s549 = scalar_select %p548, %s29, 1
      %s550 = scalar_lea.vmem %s1, %s549
      %p551 = pneg %p84
      %p552 = pneg %p81
      %p553 = scmp.lt.s32.totalorder %s30, 1
      %s554 = scalar_select %p553, %s30, 1
      %s555 = smul.addr %s554, 24
      %s556 = smul.addr %s555, 4
      %s557 = scalar_lea.vmem %s2, %s556
      %p558 = pneg %p110
      %p559 = pneg %p107
      %p560 = scmp.lt.s32.totalorder %s30, 1
      %s561 = scalar_select %p560, %s30, 1
      %s562 = smul.addr %s561, 6
      %s563 = scalar_lea.vmem %s3, %s562
      %p564 = pneg %p136
      %p565 = pneg %p133
      %p566 = scmp.lt.s32.totalorder %s30, 1
      %s567 = scalar_select %p566, %s30, 1
      %s568 = smul.addr %s567, 4
      %s569 = smul.addr %s568, 4
      %s570 = scalar_lea.vmem %s4, %s569
      %p571 = pneg %p162
      %p572 = pneg %p159
      %p573 = scmp.lt.s32.totalorder %s30, 1
      %s574 = scalar_select %p573, %s30, 1
      %s575 = scalar_lea.vmem %s5, %s574
      %p576 = pneg %p188
      %p577 = pneg %p185
      %p578 = scmp.lt.s32.totalorder %s30, 1
      %s579 = scalar_select %p578, %s30, 1
      %s580 = scalar_lea.vmem %s6, %s579
      %p581 = pneg %p214
      %p582 = pneg %p211
      %p583 = scmp.lt.s32.totalorder %s30, 1
      %s584 = scalar_select %p583, %s30, 1
      %s585 = scalar_lea.vmem %s7, %s584
      %p586 = pneg %p240
      %p587 = pneg %p237
      %p588 = scmp.lt.s32.totalorder %s30, 1
      %s589 = scalar_select %p588, %s30, 1
      %s590 = smul.addr %s589, 4
      %s591 = smul.addr %s590, 4
      %s592 = scalar_lea.vmem %s8, %s591
      %p593 = pneg %p266
      %p594 = pneg %p263
      %p595 = scmp.lt.s32.totalorder %s30, 1
      %s596 = scalar_select %p595, %s30, 1
      %s597 = scalar_lea.vmem %s9, %s596
      %p598 = pneg %p292
      %p599 = pneg %p289
      %p600 = scmp.lt.s32.totalorder %s30, 1
      %s601 = scalar_select %p600, %s30, 1
      %s602 = smul.addr %s601, 8
      %s603 = smul.addr %s602, 4
      %s604 = scalar_lea.vmem %s10, %s603
      %p605 = pneg %p318
      %p606 = pneg %p315
      %p607 = scmp.lt.s32.totalorder %s30, 1
      %s608 = scalar_select %p607, %s30, 1
      %s609 = scalar_lea.vmem %s11, %s608
      %p610 = pneg %p344
      %p611 = pneg %p341
      %p612 = scmp.lt.s32.totalorder %s30, 1
      %s613 = scalar_select %p612, %s30, 1
      %s614 = scalar_lea.vmem %s12, %s613
      %p615 = pneg %p370
      %p616 = pneg %p367
      %p617 = scmp.lt.s32.totalorder %s30, 1
      %s618 = scalar_select %p617, %s30, 1
      %s619 = scalar_lea.vmem %s13, %s618
      %p620 = pneg %p396
      %p621 = pneg %p393
      %p622 = pneg %p422
      %p623 = pneg %p419
      %p624 = scmp.lt.s32.totalorder %s29, 1
      %s625 = scalar_select %p624, %s29, 1
      %s626 = smul.addr %s625, 8
      %s627 = scalar_lea.vmem %s14, %s626
      %p628 = scmp.lt.s32.totalorder %s29, 1
      %s629 = scalar_select %p628, %s29, 1
      %s630 = smul.addr %s629, 8
      %s631 = scalar_lea.vmem %s0, %s630
      %p632 = scmp.lt.s32.totalorder %s29, 1
      %s633 = scalar_select %p632, %s29, 1
      %s634 = scalar_lea.vmem %s1, %s633
      %p635 = scmp.lt.s32.totalorder %s30, 1
      %s636 = scalar_select %p635, %s30, 1
      %s637 = smul.addr %s636, 24
      %s638 = smul.addr %s637, 4
      %s639 = scalar_lea.vmem %s2, %s638
      %p640 = scmp.lt.s32.totalorder %s30, 1
      %s641 = scalar_select %p640, %s30, 1
      %s642 = smul.addr %s641, 6
      %s643 = scalar_lea.vmem %s3, %s642
      %p644 = scmp.lt.s32.totalorder %s30, 1
      %s645 = scalar_select %p644, %s30, 1
      %s646 = smul.addr %s645, 4
      %s647 = smul.addr %s646, 4
      %s648 = scalar_lea.vmem %s4, %s647
      %p649 = scmp.lt.s32.totalorder %s30, 1
      %s650 = scalar_select %p649, %s30, 1
      %s651 = scalar_lea.vmem %s5, %s650
      %p652 = scmp.lt.s32.totalorder %s30, 1
      %s653 = scalar_select %p652, %s30, 1
      %s654 = scalar_lea.vmem %s6, %s653
      %p655 = scmp.lt.s32.totalorder %s30, 1
      %s656 = scalar_select %p655, %s30, 1
      %s657 = scalar_lea.vmem %s7, %s656
      %p658 = scmp.lt.s32.totalorder %s30, 1
      %s659 = scalar_select %p658, %s30, 1
      %s660 = smul.addr %s659, 4
      %s661 = smul.addr %s660, 4
      %s662 = scalar_lea.vmem %s8, %s661
      %p663 = scmp.lt.s32.totalorder %s30, 1
      %s664 = scalar_select %p663, %s30, 1
      %s665 = scalar_lea.vmem %s9, %s664
      %p666 = scmp.lt.s32.totalorder %s30, 1
      %s667 = scalar_select %p666, %s30, 1
      %s668 = smul.addr %s667, 8
      %s669 = smul.addr %s668, 4
      %s670 = scalar_lea.vmem %s10, %s669
      %p671 = scmp.lt.s32.totalorder %s30, 1
      %s672 = scalar_select %p671, %s30, 1
      %s673 = scalar_lea.vmem %s11, %s672
      %p674 = scmp.lt.s32.totalorder %s30, 1
      %s675 = scalar_select %p674, %s30, 1
      %s676 = scalar_lea.vmem %s12, %s675
      %p677 = scmp.lt.s32.totalorder %s30, 1
      %s678 = scalar_select %p677, %s30, 1
      %s679 = scalar_lea.vmem %s13, %s678
      %p680 = scmp.lt.s32.totalorder %s29, 1
      %s681 = scalar_select %p680, %s29, 1
      %s682 = smul.addr %s681, 8
      %s683 = scalar_lea.vmem %s14, %s682
      %p685 = scmp.eq.s32.totalorder %s30, 0
      // Predicated region
      $region77: #{bert_forward.1} parent=75 // pred_check
        %p686 = pneg %p685
      $region78: #{bert_forward.1} parent=75 // pred_check_branch
        %688 = sbr.rel (%p686) target = $region80
      $region79: #{bert_forward.1} parent=75 // pred_region
        %v689 = vld [vmem:[%s631] sm:$0xff]
        %vm690 = vcmask 261120
        %691 = vst.msk [vmem:[%s683] sm:$0xff] %vm690, %v689
      $region80: #{bert_forward.1} parent=75 // pred_fallthru
        _
      %v692 = vld [vmem:[%s683] sm:$0xff]
      %v693 = vpack.c.bf16 %v692, %v692
      %v694 = vld [vmem:[%s639] sm:$0xf]
      %v695 = vld [vmem:[%s639 + $0x4] sm:$0xf]
      %v696 = vld [vmem:[%s639 + $0x8] sm:$0xf]
      %v697 = vld [vmem:[%s639 + $0xc] sm:$0xf]
      %v698 = vld [vmem:[%s639 + $0x10] sm:$0xf]
      %v699 = vld [vmem:[%s639 + $0x14] sm:$0xf]
      %v700 = vld [vmem:[%s639 + $0x18] sm:$0xf]
      %v701 = vld [vmem:[%s639 + $0x1c] sm:$0xf]
      %v702 = vld [vmem:[%s639 + $0x20] sm:$0xf]
      %v703 = vld [vmem:[%s639 + $0x24] sm:$0xf]
      %v704 = vld [vmem:[%s639 + $0x28] sm:$0xf]
      %v705 = vld [vmem:[%s639 + $0x2c] sm:$0xf]
      %v706 = vld [vmem:[%s639 + $0x30] sm:$0xf]
      %v707 = vld [vmem:[%s639 + $0x34] sm:$0xf]
      %v708 = vld [vmem:[%s639 + $0x38] sm:$0xf]
      %v709 = vld [vmem:[%s639 + $0x3c] sm:$0xf]
      %v710 = vld [vmem:[%s639 + $0x40] sm:$0xf]
      %v711 = vld [vmem:[%s639 + $0x44] sm:$0xf]
      %v712 = vld [vmem:[%s639 + $0x48] sm:$0xf]
      %v713 = vld [vmem:[%s639 + $0x4c] sm:$0xf]
      %v714 = vld [vmem:[%s639 + $0x50] sm:$0xf]
      %v715 = vld [vmem:[%s639 + $0x54] sm:$0xf]
      %v716 = vld [vmem:[%s639 + $0x58] sm:$0xf]
      %v717 = vld [vmem:[%s639 + $0x5c] sm:$0xf]
      %v718 = vld [vmem:[%s643] sm:$0x1]
      %v719 = vld [vmem:[%s643 + $0x1] sm:$0x1]
      %v720 = vld [vmem:[%s643 + $0x2] sm:$0x1]
      %v721 = vld [vmem:[%s643 + $0x3] sm:$0x1]
      %v722 = vld [vmem:[%s643 + $0x4] sm:$0x1]
      %v723 = vld [vmem:[%s643 + $0x5] sm:$0x1]
      %v730 = vlaneseq
      %v731 = vshrl.u32 %v730, 7
      %v732 = vsub.s32 0, %v731
      %v733 = vrot.slane %v718, %v732
      %v734 = vlaneseq
      %v735 = vshrl.u32 %v734, 7
      %v736 = vsub.s32 0, %v735
      %v737 = vrot.slane %v719, %v736
      %v738 = vlaneseq
      %v739 = vshrl.u32 %v738, 7
      %v740 = vsub.s32 0, %v739
      %v741 = vrot.slane %v720, %v740
      %v742 = vlaneseq
      %v743 = vshrl.u32 %v742, 7
      %v744 = vsub.s32 0, %v743
      %v745 = vrot.slane %v721, %v744
      %v746 = vlaneseq
      %v747 = vshrl.u32 %v746, 7
      %v748 = vsub.s32 0, %v747
      %v749 = vrot.slane %v722, %v748
      %v750 = vlaneseq
      %v751 = vshrl.u32 %v750, 7
      %v752 = vsub.s32 0, %v751
      %v753 = vrot.slane %v723, %v752
      %v764 = vunpack.c.l.b16 %v694
      %v765 = vunpack.c.l.b16 %v695
      %v766 = vunpack.c.l.b16 %v696
      %v767 = vunpack.c.l.b16 %v697
      %v768 = vpack.c.b16 %v765, %v764
      %v769 = vpack.c.b16 %v767, %v766
      %vm772 = vcmask 261120
      %v774 = vsel %vm772, %v693, 0
      %776 = vmatprep.subr.bf16.mxu0 0
      %777 = vmatpush1.bf16.msra.mxu0 %v768
      %778 = vmatprep.subr.bf16.mxu0 0
      %779 = vmatpush1.bf16.msra.mxu0 %v769
      %780 = vmatprep.subr.bf16.mxu0 0
      %781 = vmatpush1.bf16.msra.mxu0 0
      %782 = vmatprep.subr.bf16.mxu0 0
      %783 = vmatpush1.bf16.msra.mxu0 0
      %784 = vmatprep.subr.bf16.mxu0 0
      %785 = vmatpush1.bf16.msra.mxu0 0
      %786 = vmatprep.subr.bf16.mxu0 0
      %787 = vmatpush1.bf16.msra.mxu0 0
      %788 = vmatprep.subr.bf16.mxu0 0
      %789 = vmatpush1.bf16.msra.mxu0 0
      %790 = vmatprep.subr.bf16.mxu0 0
      %791 = vmatpush1.bf16.msra.mxu0 0
      %792 = vmatprep.subr.bf16.mxu0 0
      %793 = vmatpush1.bf16.msra.mxu0 0
      %794 = vmatprep.subr.bf16.mxu0 0
      %795 = vmatpush1.bf16.msra.mxu0 0
      %796 = vmatprep.subr.bf16.mxu0 0
      %797 = vmatpush1.bf16.msra.mxu0 0
      %798 = vmatprep.subr.bf16.mxu0 0
      %799 = vmatpush1.bf16.msra.mxu0 0
      %800 = vmatprep.subr.bf16.mxu0 0
      %801 = vmatpush1.bf16.msra.mxu0 0
      %802 = vmatprep.subr.bf16.mxu0 0
      %803 = vmatpush1.bf16.msra.mxu0 0
      %804 = vmatprep.subr.bf16.mxu0 0
      %805 = vmatpush1.bf16.msra.mxu0 0
      %806 = vmatprep.subr.bf16.mxu0 0
      %807 = vmatpush1.bf16.msra.mxu0 0
      %808 = vmatprep.mubr.bf16.mxu0 0
      %809 = vmatmul.mubr.bf16.gmra.mrb[0].mxu0 %v774
      %v810 = vpop.f32.mrb[0].mxu0
      %v811 = vadd.f32 %v733, %v810
      %v812 = vpop.f32.mrb[0].mxu0
      %v813 = vpop.f32.mrb[0].mxu0
      %v814 = vpop.f32.mrb[0].mxu0
      %815 = vdwg.mxu0
      %v820 = vunpack.c.l.b16 %v698
      %v821 = vunpack.c.l.b16 %v699
      %v822 = vunpack.c.l.b16 %v700
      %v823 = vunpack.c.l.b16 %v701
      %v824 = vpack.c.b16 %v821, %v820
      %v825 = vpack.c.b16 %v823, %v822
      %828 = vmatprep.subr.bf16.mxu0 0
      %829 = vmatpush1.bf16.msra.mxu0 %v824
      %830 = vmatprep.subr.bf16.mxu0 0
      %831 = vmatpush1.bf16.msra.mxu0 %v825
      %832 = vmatprep.subr.bf16.mxu0 0
      %833 = vmatpush1.bf16.msra.mxu0 0
      %834 = vmatprep.subr.bf16.mxu0 0
      %835 = vmatpush1.bf16.msra.mxu0 0
      %836 = vmatprep.subr.bf16.mxu0 0
      %837 = vmatpush1.bf16.msra.mxu0 0
      %838 = vmatprep.subr.bf16.mxu0 0
      %839 = vmatpush1.bf16.msra.mxu0 0
      %840 = vmatprep.subr.bf16.mxu0 0
      %841 = vmatpush1.bf16.msra.mxu0 0
      %842 = vmatprep.subr.bf16.mxu0 0
      %843 = vmatpush1.bf16.msra.mxu0 0
      %844 = vmatprep.subr.bf16.mxu0 0
      %845 = vmatpush1.bf16.msra.mxu0 0
      %846 = vmatprep.subr.bf16.mxu0 0
      %847 = vmatpush1.bf16.msra.mxu0 0
      %848 = vmatprep.subr.bf16.mxu0 0
      %849 = vmatpush1.bf16.msra.mxu0 0
      %850 = vmatprep.subr.bf16.mxu0 0
      %851 = vmatpush1.bf16.msra.mxu0 0
      %852 = vmatprep.subr.bf16.mxu0 0
      %853 = vmatpush1.bf16.msra.mxu0 0
      %854 = vmatprep.subr.bf16.mxu0 0
      %855 = vmatpush1.bf16.msra.mxu0 0
      %856 = vmatprep.subr.bf16.mxu0 0
      %857 = vmatpush1.bf16.msra.mxu0 0
      %858 = vmatprep.subr.bf16.mxu0 0
      %859 = vmatpush1.bf16.msra.mxu0 0
      %860 = vmatprep.mubr.bf16.mxu0 0
      %861 = vmatmul.mubr.bf16.gmra.mrb[0].mxu0 %v774
      %v862 = vpop.f32.mrb[0].mxu0
      %v863 = vadd.f32 %v737, %v862
      %v864 = vpop.f32.mrb[0].mxu0
      %v865 = vpop.f32.mrb[0].mxu0
      %v866 = vpop.f32.mrb[0].mxu0
      %867 = vdwg.mxu0
      %v872 = vunpack.c.l.b16 %v702
      %v873 = vunpack.c.l.b16 %v703
      %v874 = vunpack.c.l.b16 %v704
      %v875 = vunpack.c.l.b16 %v705
      %v876 = vpack.c.b16 %v873, %v872
      %v877 = vpack.c.b16 %v875, %v874
      %880 = vmatprep.subr.bf16.mxu0 0
      %881 = vmatpush1.bf16.msra.mxu0 %v876
      %882 = vmatprep.subr.bf16.mxu0 0
      %883 = vmatpush1.bf16.msra.mxu0 %v877
      %884 = vmatprep.subr.bf16.mxu0 0
      %885 = vmatpush1.bf16.msra.mxu0 0
      %886 = vmatprep.subr.bf16.mxu0 0
      %887 = vmatpush1.bf16.msra.mxu0 0
      %888 = vmatprep.subr.bf16.mxu0 0
      %889 = vmatpush1.bf16.msra.mxu0 0
      %890 = vmatprep.subr.bf16.mxu0 0
      %891 = vmatpush1.bf16.msra.mxu0 0
      %892 = vmatprep.subr.bf16.mxu0 0
      %893 = vmatpush1.bf16.msra.mxu0 0
      %894 = vmatprep.subr.bf16.mxu0 0
      %895 = vmatpush1.bf16.msra.mxu0 0
      %896 = vmatprep.subr.bf16.mxu0 0
      %897 = vmatpush1.bf16.msra.mxu0 0
      %898 = vmatprep.subr.bf16.mxu0 0
      %899 = vmatpush1.bf16.msra.mxu0 0
      %900 = vmatprep.subr.bf16.mxu0 0
      %901 = vmatpush1.bf16.msra.mxu0 0
      %902 = vmatprep.subr.bf16.mxu0 0
      %903 = vmatpush1.bf16.msra.mxu0 0
      %904 = vmatprep.subr.bf16.mxu0 0
      %905 = vmatpush1.bf16.msra.mxu0 0
      %906 = vmatprep.subr.bf16.mxu0 0
      %907 = vmatpush1.bf16.msra.mxu0 0
      %908 = vmatprep.subr.bf16.mxu0 0
      %909 = vmatpush1.bf16.msra.mxu0 0
      %910 = vmatprep.subr.bf16.mxu0 0
      %911 = vmatpush1.bf16.msra.mxu0 0
      %912 = vmatprep.mubr.bf16.mxu0 0
      %913 = vmatmul.mubr.bf16.gmra.mrb[0].mxu0 %v774
      %v914 = vpop.f32.mrb[0].mxu0
      %v915 = vadd.f32 %v741, %v914
      %v916 = vpop.f32.mrb[0].mxu0
      %v917 = vpop.f32.mrb[0].mxu0
      %v918 = vpop.f32.mrb[0].mxu0
      %919 = vdwg.mxu0
      %v924 = vunpack.c.l.b16 %v706
      %v925 = vunpack.c.l.b16 %v707
      %v926 = vunpack.c.l.b16 %v708
      %v927 = vunpack.c.l.b16 %v709
      %v928 = vpack.c.b16 %v925, %v924
      %v929 = vpack.c.b16 %v927, %v926
      %932 = vmatprep.subr.bf16.mxu0 0
      %933 = vmatpush1.bf16.msra.mxu0 %v928
      %934 = vmatprep.subr.bf16.mxu0 0
      %935 = vmatpush1.bf16.msra.mxu0 %v929
      %936 = vmatprep.subr.bf16.mxu0 0
      %937 = vmatpush1.bf16.msra.mxu0 0
      %938 = vmatprep.subr.bf16.mxu0 0
      %939 = vmatpush1.bf16.msra.mxu0 0
      %940 = vmatprep.subr.bf16.mxu0 0
      %941 = vmatpush1.bf16.msra.mxu0 0
      %942 = vmatprep.subr.bf16.mxu0 0
      %943 = vmatpush1.bf16.msra.mxu0 0
      %944 = vmatprep.subr.bf16.mxu0 0
      %945 = vmatpush1.bf16.msra.mxu0 0
      %946 = vmatprep.subr.bf16.mxu0 0
      %947 = vmatpush1.bf16.msra.mxu0 0
      %948 = vmatprep.subr.bf16.mxu0 0
      %949 = vmatpush1.bf16.msra.mxu0 0
      %950 = vmatprep.subr.bf16.mxu0 0
      %951 = vmatpush1.bf16.msra.mxu0 0
      %952 = vmatprep.subr.bf16.mxu0 0
      %953 = vmatpush1.bf16.msra.mxu0 0
      %954 = vmatprep.subr.bf16.mxu0 0
      %955 = vmatpush1.bf16.msra.mxu0 0
      %956 = vmatprep.subr.bf16.mxu0 0
      %957 = vmatpush1.bf16.msra.mxu0 0
      %958 = vmatprep.subr.bf16.mxu0 0
      %959 = vmatpush1.bf16.msra.mxu0 0
      %960 = vmatprep.subr.bf16.mxu0 0
      %961 = vmatpush1.bf16.msra.mxu0 0
      %962 = vmatprep.subr.bf16.mxu0 0
      %963 = vmatpush1.bf16.msra.mxu0 0
      %964 = vmatprep.mubr.bf16.mxu0 0
      %965 = vmatmul.mubr.bf16.gmra.mrb[0].mxu0 %v774
      %v966 = vpop.f32.mrb[0].mxu0
      %v967 = vadd.f32 %v745, %v966
      %v968 = vpop.f32.mrb[0].mxu0
      %v969 = vpop.f32.mrb[0].mxu0
      %v970 = vpop.f32.mrb[0].mxu0
      %971 = vdwg.mxu0
      %v976 = vunpack.c.l.b16 %v710
      %v977 = vunpack.c.l.b16 %v711
      %v978 = vunpack.c.l.b16 %v712
      %v979 = vunpack.c.l.b16 %v713
      %v980 = vpack.c.b16 %v977, %v976
      %v981 = vpack.c.b16 %v979, %v978
      %984 = vmatprep.subr.bf16.mxu0 0
      %985 = vmatpush1.bf16.msra.mxu0 %v980
      %986 = vmatprep.subr.bf16.mxu0 0
      %987 = vmatpush1.bf16.msra.mxu0 %v981
      %988 = vmatprep.subr.bf16.mxu0 0
      %989 = vmatpush1.bf16.msra.mxu0 0
      %990 = vmatprep.subr.bf16.mxu0 0
      %991 = vmatpush1.bf16.msra.mxu0 0
      %992 = vmatprep.subr.bf16.mxu0 0
      %993 = vmatpush1.bf16.msra.mxu0 0
      %994 = vmatprep.subr.bf16.mxu0 0
      %995 = vmatpush1.bf16.msra.mxu0 0
      %996 = vmatprep.subr.bf16.mxu0 0
      %997 = vmatpush1.bf16.msra.mxu0 0
      %998 = vmatprep.subr.bf16.mxu0 0
      %999 = vmatpush1.bf16.msra.mxu0 0
      %1000 = vmatprep.subr.bf16.mxu0 0
      %1001 = vmatpush1.bf16.msra.mxu0 0
      %1002 = vmatprep.subr.bf16.mxu0 0
      %1003 = vmatpush1.bf16.msra.mxu0 0
      %1004 = vmatprep.subr.bf16.mxu0 0
      %1005 = vmatpush1.bf16.msra.mxu0 0
      %1006 = vmatprep.subr.bf16.mxu0 0
      %1007 = vmatpush1.bf16.msra.mxu0 0
      %1008 = vmatprep.subr.bf16.mxu0 0
      %1009 = vmatpush1.bf16.msra.mxu0 0
      %1010 = vmatprep.subr.bf16.mxu0 0
      %1011 = vmatpush1.bf16.msra.mxu0 0
      %1012 = vmatprep.subr.bf16.mxu0 0
      %1013 = vmatpush1.bf16.msra.mxu0 0
      %1014 = vmatprep.subr.bf16.mxu0 0
      %1015 = vmatpush1.bf16.msra.mxu0 0
      %1016 = vmatprep.mubr.bf16.mxu0 0
      %1017 = vmatmul.mubr.bf16.gmra.mrb[0].mxu0 %v774
      %v1018 = vpop.f32.mrb[0].mxu0
      %v1019 = vadd.f32 %v749, %v1018
      %v1020 = vpop.f32.mrb[0].mxu0
      %v1021 = vpop.f32.mrb[0].mxu0
      %v1022 = vpop.f32.mrb[0].mxu0
      %1023 = vdwg.mxu0
      %v1028 = vunpack.c.l.b16 %v714
      %v1029 = vunpack.c.l.b16 %v715
      %v1030 = vunpack.c.l.b16 %v716
      %v1031 = vunpack.c.l.b16 %v717
      %v1032 = vpack.c.b16 %v1029, %v1028
      %v1033 = vpack.c.b16 %v1031, %v1030
      %1036 = vmatprep.subr.bf16.mxu0 0
      %1037 = vmatpush1.bf16.msra.mxu0 %v1032
      %1038 = vmatprep.subr.bf16.mxu0 0
      %1039 = vmatpush1.bf16.msra.mxu0 %v1033
      %1040 = vmatprep.subr.bf16.mxu0 0
      %1041 = vmatpush1.bf16.msra.mxu0 0
      %1042 = vmatprep.subr.bf16.mxu0 0
      %1043 = vmatpush1.bf16.msra.mxu0 0
      %1044 = vmatprep.subr.bf16.mxu0 0
      %1045 = vmatpush1.bf16.msra.mxu0 0
      %1046 = vmatprep.subr.bf16.mxu0 0
      %1047 = vmatpush1.bf16.msra.mxu0 0
      %1048 = vmatprep.subr.bf16.mxu0 0
      %1049 = vmatpush1.bf16.msra.mxu0 0
      %1050 = vmatprep.subr.bf16.mxu0 0
      %1051 = vmatpush1.bf16.msra.mxu0 0
      %1052 = vmatprep.subr.bf16.mxu0 0
      %1053 = vmatpush1.bf16.msra.mxu0 0
      %1054 = vmatprep.subr.bf16.mxu0 0
      %1055 = vmatpush1.bf16.msra.mxu0 0
      %1056 = vmatprep.subr.bf16.mxu0 0
      %1057 = vmatpush1.bf16.msra.mxu0 0
      %1058 = vmatprep.subr.bf16.mxu0 0
      %1059 = vmatpush1.bf16.msra.mxu0 0
      %1060 = vmatprep.subr.bf16.mxu0 0
      %1061 = vmatpush1.bf16.msra.mxu0 0
      %1062 = vmatprep.subr.bf16.mxu0 0
      %1063 = vmatpush1.bf16.msra.mxu0 0
      %1064 = vmatprep.subr.bf16.mxu0 0
      %1065 = vmatpush1.bf16.msra.mxu0 0
      %1066 = vmatprep.subr.bf16.mxu0 0
      %1067 = vmatpush1.bf16.msra.mxu0 0
      %1068 = vmatprep.mubr.bf16.mxu0 0
      %1069 = vmatmul.mubr.bf16.gmra.mrb[0].mxu0 %v774
      %v1070 = vpop.f32.mrb[0].mxu0
      %v1071 = vadd.f32 %v753, %v1070
      %v1072 = vpop.f32.mrb[0].mxu0
      %v1073 = vpop.f32.mrb[0].mxu0
      %v1074 = vpop.f32.mrb[0].mxu0
      %1075 = vdwg.mxu0
      %v1076 = vmul.f32 %v811, 0.25
      %v1077 = vmul.f32 %v863, 0.25
      %v1078 = vpack.c.bf16 %v1076, %v1076
      %v1079 = vpack.c.bf16 %v1077, %v1077
      %v1080 = vpack.c.bf16 %v915, %v915
      %v1081 = vpack.c.bf16 %v967, %v967
      %v1082 = vpack.c.bf16 %v1019, %v1019
      %v1083 = vpack.c.bf16 %v1071, %v1071
      %v1084 = vld [vmem:[%s634] sm:$0x1]
      %v1086 = vlaneseq
      %v1087 = vshrl.u32 %v1086, 7
      %v1088 = vsub.s32 0, %v1087
      %v1089 = vrot.slane %v1084, %v1088
      %vm1091 = vcmask 130048
      %v1093 = vsel %vm1091, %v1078, 0
      %v1096 = vsel %vm1091, %v1080, 0
      %1098 = vmatprep.subr.bf16.mxu0 0
      %1099 = vmatpush1.bf16.xpose.msra.mxu0 %v1096
      %1100 = vmatprep.subr.bf16.mxu0 0
      %1101 = vmatpush1.bf16.xpose.msra.mxu0 0
      %1102 = vmatprep.subr.bf16.mxu0 0
      %1103 = vmatpush1.bf16.xpose.msra.mxu0 0
      %1104 = vmatprep.subr.bf16.mxu0 0
      %1105 = vmatpush1.bf16.xpose.msra.mxu0 0
      %1106 = vmatprep.subr.bf16.mxu0 0
      %1107 = vmatpush1.bf16.xpose.msra.mxu0 0
      %1108 = vmatprep.subr.bf16.mxu0 0
      %1109 = vmatpush1.bf16.xpose.msra.mxu0 0
      %1110 = vmatprep.subr.bf16.mxu0 0
      %1111 = vmatpush1.bf16.xpose.msra.mxu0 0
      %1112 = vmatprep.subr.bf16.mxu0 0
      %1113 = vmatpush1.bf16.xpose.msra.mxu0 0
      %1114 = vmatprep.subr.bf16.mxu0 0
      %1115 = vmatpush1.bf16.xpose.msra.mxu0 0
      %1116 = vmatprep.subr.bf16.mxu0 0
      %1117 = vmatpush1.bf16.xpose.msra.mxu0 0
      %1118 = vmatprep.subr.bf16.mxu0 0
      %1119 = vmatpush1.bf16.xpose.msra.mxu0 0
      %1120 = vmatprep.subr.bf16.mxu0 0
      %1121 = vmatpush1.bf16.xpose.msra.mxu0 0
      %1122 = vmatprep.subr.bf16.mxu0 0
      %1123 = vmatpush1.bf16.xpose.msra.mxu0 0
      %1124 = vmatprep.subr.bf16.mxu0 0
      %1125 = vmatpush1.bf16.xpose.msra.mxu0 0
      %1126 = vmatprep.subr.bf16.mxu0 0
      %1127 = vmatpush1.bf16.xpose.msra.mxu0 0
      %1128 = vmatprep.subr.bf16.mxu0 0
      %1129 = vmatpush1.bf16.xpose.msra.mxu0 0
      %1130 = vmatprep.mubr.bf16.mxu0 0
      %1131 = vmatmul.mubr.bf16.gmra.mrb[0].mxu0 %v1093
      %v1132 = vpop.f32.mrb[0].mxu0
      %v1133 = vadd.f32 %v1089, %v1132
      %v1134 = vpop.f32.mrb[0].mxu0
      %v1135 = vpop.f32.mrb[0].mxu0
      %v1136 = vpop.f32.mrb[0].mxu0
      %1137 = vdwg.mxu0
      %v1139 = vsel %vm1091, %v1079, 0
      %v1142 = vsel %vm1091, %v1081, 0
      %1144 = vmatprep.subr.bf16.mxu0 0
      %1145 = vmatpush1.bf16.xpose.msra.mxu0 %v1142
      %1146 = vmatprep.subr.bf16.mxu0 0
      %1147 = vmatpush1.bf16.xpose.msra.mxu0 0
      %1148 = vmatprep.subr.bf16.mxu0 0
      %1149 = vmatpush1.bf16.xpose.msra.mxu0 0
      %1150 = vmatprep.subr.bf16.mxu0 0
      %1151 = vmatpush1.bf16.xpose.msra.mxu0 0
      %1152 = vmatprep.subr.bf16.mxu0 0
      %1153 = vmatpush1.bf16.xpose.msra.mxu0 0
      %1154 = vmatprep.subr.bf16.mxu0 0
      %1155 = vmatpush1.bf16.xpose.msra.mxu0 0
      %1156 = vmatprep.subr.bf16.mxu0 0
      %1157 = vmatpush1.bf16.xpose.msra.mxu0 0
      %1158 = vmatprep.subr.bf16.mxu0 0
      %1159 = vmatpush1.bf16.xpose.msra.mxu0 0
      %1160 = vmatprep.subr.bf16.mxu0 0
      %1161 = vmatpush1.bf16.xpose.msra.mxu0 0
      %1162 = vmatprep.subr.bf16.mxu0 0
      %1163 = vmatpush1.bf16.xpose.msra.mxu0 0
      %1164 = vmatprep.subr.bf16.mxu0 0
      %1165 = vmatpush1.bf16.xpose.msra.mxu0 0
      %1166 = vmatprep.subr.bf16.mxu0 0
      %1167 = vmatpush1.bf16.xpose.msra.mxu0 0
      %1168 = vmatprep.subr.bf16.mxu0 0
      %1169 = vmatpush1.bf16.xpose.msra.mxu0 0
      %1170 = vmatprep.subr.bf16.mxu0 0
      %1171 = vmatpush1.bf16.xpose.msra.mxu0 0
      %1172 = vmatprep.subr.bf16.mxu0 0
      %1173 = vmatpush1.bf16.xpose.msra.mxu0 0
      %1174 = vmatprep.subr.bf16.mxu0 0
      %1175 = vmatpush1.bf16.xpose.msra.mxu0 0
      %1176 = vmatprep.mubr.bf16.mxu0 0
      %1177 = vmatmul.mubr.bf16.gmra.mrb[0].mxu0 %v1139
      %v1178 = vpop.f32.mrb[0].mxu0
      %v1179 = vadd.f32 %v1089, %v1178
      %v1180 = vpop.f32.mrb[0].mxu0
      %v1181 = vpop.f32.mrb[0].mxu0
      %v1182 = vpop.f32.mrb[0].mxu0
      %1183 = vdwg.mxu0
      %vm1184 = vcmask 64512
      %v1185 = vsel %vm1184, %v1133, -inf
      %1186 = vmax.xlane.f32.xlu0 %v1185
      %v1187 = vpop.xlane.xlu0 %1186
      %v1188 = vsel %vm1184, %v1179, -inf
      %1189 = vmax.xlane.f32.xlu0 %v1188
      %v1190 = vpop.xlane.xlu0 %1189
      %v1191 = vsub.f32 %v1133, %v1187
      %v1192 = vsub.f32 %v1179, %v1190
      %v1193 = vmul.f32 %v1191, 1.442695
      %v1194 = vpow.pop %v1193
      %v1195 = vmul.f32 %v1192, 1.442695
      %v1196 = vpow.pop %v1195
      %v1197 = vsel %vm1184, %v1194, 0.0
      %1198 = vadd.xlane.f32.xlu0 %v1197
      %v1199 = vpop.xlane.xlu0 %1198
      %v1200 = vsel %vm1184, %v1196, 0.0
      %1201 = vadd.xlane.f32.xlu0 %v1200
      %v1202 = vpop.xlane.xlu0 %1201
      %v1203 = vrcp.pop %v1199
      %v1204 = vrcp.pop %v1202
      %v1205 = vmul.f32 %v1194, %v1203
      %v1206 = vmul.f32 %v1196, %v1204
      %v1207 = vpack.c.bf16 %v1205, %v1205
      %v1208 = vpack.c.bf16 %v1206, %v1206
      %v1210 = vsel %vm1184, %v1207, 0
      %vm1212 = vcmask 1043456
      %v1214 = vsel %vm1212, %v1082, 0
      %1216 = vmatprep.subr.bf16.mxu0 0
      %1217 = vmatpush1.bf16.msra.mxu0 %v1214
      %1218 = vmatprep.subr.bf16.mxu0 0
      %1219 = vmatpush1.bf16.msra.mxu0 0
      %1220 = vmatprep.subr.bf16.mxu0 0
      %1221 = vmatpush1.bf16.msra.mxu0 0
      %1222 = vmatprep.subr.bf16.mxu0 0
      %1223 = vmatpush1.bf16.msra.mxu0 0
      %1224 = vmatprep.subr.bf16.mxu0 0
      %1225 = vmatpush1.bf16.msra.mxu0 0
      %1226 = vmatprep.subr.bf16.mxu0 0
      %1227 = vmatpush1.bf16.msra.mxu0 0
      %1228 = vmatprep.subr.bf16.mxu0 0
      %1229 = vmatpush1.bf16.msra.mxu0 0
      %1230 = vmatprep.subr.bf16.mxu0 0
      %1231 = vmatpush1.bf16.msra.mxu0 0
      %1232 = vmatprep.subr.bf16.mxu0 0
      %1233 = vmatpush1.bf16.msra.mxu0 0
      %1234 = vmatprep.subr.bf16.mxu0 0
      %1235 = vmatpush1.bf16.msra.mxu0 0
      %1236 = vmatprep.subr.bf16.mxu0 0
      %1237 = vmatpush1.bf16.msra.mxu0 0
      %1238 = vmatprep.subr.bf16.mxu0 0
      %1239 = vmatpush1.bf16.msra.mxu0 0
      %1240 = vmatprep.subr.bf16.mxu0 0
      %1241 = vmatpush1.bf16.msra.mxu0 0
      %1242 = vmatprep.subr.bf16.mxu0 0
      %1243 = vmatpush1.bf16.msra.mxu0 0
      %1244 = vmatprep.subr.bf16.mxu0 0
      %1245 = vmatpush1.bf16.msra.mxu0 0
      %1246 = vmatprep.subr.bf16.mxu0 0
      %1247 = vmatpush1.bf16.msra.mxu0 0
      %1248 = vmatprep.mubr.bf16.mxu0 0
      %1249 = vmatmul.mubr.bf16.gmra.mrb[0].mxu0 %v1210
      %v1250 = vpop.f32.mrb[0].mxu0
      %v1251 = vadd.f32 0.0, %v1250
      %v1252 = vpop.f32.mrb[0].mxu0
      %v1253 = vpop.f32.mrb[0].mxu0
      %v1254 = vpop.f32.mrb[0].mxu0
      %1255 = vdwg.mxu0
      %v1257 = vsel %vm1184, %v1208, 0
      %v1260 = vsel %vm1212, %v1083, 0
      %1262 = vmatprep.subr.bf16.mxu0 0
      %1263 = vmatpush1.bf16.msra.mxu0 %v1260
      %1264 = vmatprep.subr.bf16.mxu0 0
      %1265 = vmatpush1.bf16.msra.mxu0 0
      %1266 = vmatprep.subr.bf16.mxu0 0
      %1267 = vmatpush1.bf16.msra.mxu0 0
      %1268 = vmatprep.subr.bf16.mxu0 0
      %1269 = vmatpush1.bf16.msra.mxu0 0
      %1270 = vmatprep.subr.bf16.mxu0 0
      %1271 = vmatpush1.bf16.msra.mxu0 0
      %1272 = vmatprep.subr.bf16.mxu0 0
      %1273 = vmatpush1.bf16.msra.mxu0 0
      %1274 = vmatprep.subr.bf16.mxu0 0
      %1275 = vmatpush1.bf16.msra.mxu0 0
      %1276 = vmatprep.subr.bf16.mxu0 0
      %1277 = vmatpush1.bf16.msra.mxu0 0
      %1278 = vmatprep.subr.bf16.mxu0 0
      %1279 = vmatpush1.bf16.msra.mxu0 0
      %1280 = vmatprep.subr.bf16.mxu0 0
      %1281 = vmatpush1.bf16.msra.mxu0 0
      %1282 = vmatprep.subr.bf16.mxu0 0
      %1283 = vmatpush1.bf16.msra.mxu0 0
      %1284 = vmatprep.subr.bf16.mxu0 0
      %1285 = vmatpush1.bf16.msra.mxu0 0
      %1286 = vmatprep.subr.bf16.mxu0 0
      %1287 = vmatpush1.bf16.msra.mxu0 0
      %1288 = vmatprep.subr.bf16.mxu0 0
      %1289 = vmatpush1.bf16.msra.mxu0 0
      %1290 = vmatprep.subr.bf16.mxu0 0
      %1291 = vmatpush1.bf16.msra.mxu0 0
      %1292 = vmatprep.subr.bf16.mxu0 0
      %1293 = vmatpush1.bf16.msra.mxu0 0
      %1294 = vmatprep.mubr.bf16.mxu0 0
      %1295 = vmatmul.mubr.bf16.gmra.mrb[0].mxu0 %v1257
      %v1296 = vpop.f32.mrb[0].mxu0
      %v1297 = vadd.f32 0.0, %v1296
      %v1298 = vpop.f32.mrb[0].mxu0
      %v1299 = vpop.f32.mrb[0].mxu0
      %v1300 = vpop.f32.mrb[0].mxu0
      %1301 = vdwg.mxu0
      %v1302 = vpack.c.bf16 %v1251, %v1251
      %v1303 = vpack.c.bf16 %v1297, %v1297
      %v1304 = vld [vmem:[%s648] sm:$0xf]
      %v1305 = vld [vmem:[%s648 + $0x4] sm:$0xf]
      %v1306 = vld [vmem:[%s648 + $0x8] sm:$0xf]
      %v1307 = vld [vmem:[%s648 + $0xc] sm:$0xf]
      %v1310 = vunpack.c.l.b16 %v1304
      %v1311 = vunpack.c.l.b16 %v1305
      %v1312 = vpack.c.b16 %v1311, %v1310
      %v1315 = vsel %vm1091, %v1302, 0
      %1317 = vmatprep.subr.bf16.mxu0 0
      %1318 = vmatpush1.bf16.msra.mxu0 %v1312
      %1319 = vmatprep.subr.bf16.mxu0 0
      %1320 = vmatpush1.bf16.msra.mxu0 0
      %1321 = vmatprep.subr.bf16.mxu0 0
      %1322 = vmatpush1.bf16.msra.mxu0 0
      %1323 = vmatprep.subr.bf16.mxu0 0
      %1324 = vmatpush1.bf16.msra.mxu0 0
      %1325 = vmatprep.subr.bf16.mxu0 0
      %1326 = vmatpush1.bf16.msra.mxu0 0
      %1327 = vmatprep.subr.bf16.mxu0 0
      %1328 = vmatpush1.bf16.msra.mxu0 0
      %1329 = vmatprep.subr.bf16.mxu0 0
      %1330 = vmatpush1.bf16.msra.mxu0 0
      %1331 = vmatprep.subr.bf16.mxu0 0
      %1332 = vmatpush1.bf16.msra.mxu0 0
      %1333 = vmatprep.subr.bf16.mxu0 0
      %1334 = vmatpush1.bf16.msra.mxu0 0
      %1335 = vmatprep.subr.bf16.mxu0 0
      %1336 = vmatpush1.bf16.msra.mxu0 0
      %1337 = vmatprep.subr.bf16.mxu0 0
      %1338 = vmatpush1.bf16.msra.mxu0 0
      %1339 = vmatprep.subr.bf16.mxu0 0
      %1340 = vmatpush1.bf16.msra.mxu0 0
      %1341 = vmatprep.subr.bf16.mxu0 0
      %1342 = vmatpush1.bf16.msra.mxu0 0
      %1343 = vmatprep.subr.bf16.mxu0 0
      %1344 = vmatpush1.bf16.msra.mxu0 0
      %1345 = vmatprep.subr.bf16.mxu0 0
      %1346 = vmatpush1.bf16.msra.mxu0 0
      %1347 = vmatprep.subr.bf16.mxu0 0
      %1348 = vmatpush1.bf16.msra.mxu0 0
      %1349 = vmatprep.mubr.bf16.mxu0 0
      %1350 = vmatmul.mubr.bf16.gmra.mrb[0].mxu0 %v1315
      %v1351 = vpop.f32.mrb[0].mxu0
      %v1352 = vadd.f32 0.0, %v1351
      %v1353 = vpop.f32.mrb[0].mxu0
      %v1354 = vpop.f32.mrb[0].mxu0
      %v1355 = vpop.f32.mrb[0].mxu0
      %1356 = vdwg.mxu0
      %v1359 = vunpack.c.l.b16 %v1306
      %v1360 = vunpack.c.l.b16 %v1307
      %v1361 = vpack.c.b16 %v1360, %v1359
      %v1364 = vsel %vm1091, %v1303, 0
      %1366 = vmatprep.subr.bf16.mxu0 0
      %1367 = vmatpush1.bf16.msra.mxu0 %v1361
      %1368 = vmatprep.subr.bf16.mxu0 0
      %1369 = vmatpush1.bf16.msra.mxu0 0
      %1370 = vmatprep.subr.bf16.mxu0 0
      %1371 = vmatpush1.bf16.msra.mxu0 0
      %1372 = vmatprep.subr.bf16.mxu0 0
      %1373 = vmatpush1.bf16.msra.mxu0 0
      %1374 = vmatprep.subr.bf16.mxu0 0
      %1375 = vmatpush1.bf16.msra.mxu0 0
      %1376 = vmatprep.subr.bf16.mxu0 0
      %1377 = vmatpush1.bf16.msra.mxu0 0
      %1378 = vmatprep.subr.bf16.mxu0 0
      %1379 = vmatpush1.bf16.msra.mxu0 0
      %1380 = vmatprep.subr.bf16.mxu0 0
      %1381 = vmatpush1.bf16.msra.mxu0 0
      %1382 = vmatprep.subr.bf16.mxu0 0
      %1383 = vmatpush1.bf16.msra.mxu0 0
      %1384 = vmatprep.subr.bf16.mxu0 0
      %1385 = vmatpush1.bf16.msra.mxu0 0
      %1386 = vmatprep.subr.bf16.mxu0 0
      %1387 = vmatpush1.bf16.msra.mxu0 0
      %1388 = vmatprep.subr.bf16.mxu0 0
      %1389 = vmatpush1.bf16.msra.mxu0 0
      %1390 = vmatprep.subr.bf16.mxu0 0
      %1391 = vmatpush1.bf16.msra.mxu0 0
      %1392 = vmatprep.subr.bf16.mxu0 0
      %1393 = vmatpush1.bf16.msra.mxu0 0
      %1394 = vmatprep.subr.bf16.mxu0 0
      %1395 = vmatpush1.bf16.msra.mxu0 0
      %1396 = vmatprep.subr.bf16.mxu0 0
      %1397 = vmatpush1.bf16.msra.mxu0 0
      %1398 = vmatprep.mubr.bf16.mxu0 0
      %1399 = vmatmul.mubr.bf16.gmra.mrb[0].mxu0 %v1364
      %v1400 = vpop.f32.mrb[0].mxu0
      %v1401 = vadd.f32 0.0, %v1400
      %v1402 = vpop.f32.mrb[0].mxu0
      %v1403 = vpop.f32.mrb[0].mxu0
      %v1404 = vpop.f32.mrb[0].mxu0
      %1405 = vdwg.mxu0
      %v1406 = vsel %vm772, %v1352, 0.0
      %v1407 = vsel %vm772, %v1401, 0.0
      %v1408 = vadd.f32 %v1406, %v1407
      %v1409 = vld [vmem:[%s651] sm:$0x1]
      %v1411 = vlaneseq
      %v1412 = vshrl.u32 %v1411, 7
      %v1413 = vsub.s32 0, %v1412
      %v1414 = vrot.slane %v1409, %v1413
      %v1416 = vadd.f32 %v1408, %v1414
      %v1417 = vadd.f32 %v1416, %v692
      %v1418 = vld [vmem:[%s654] sm:$0x1]
      %v1419 = vld [vmem:[%s657] sm:$0x1]
      %v1420 = vsel %vm772, %v1417, 0.0
      %1421 = vadd.xlane.f32.xlu0 %v1420
      %v1422 = vpop.xlane.xlu0 %1421
      %v1423 = vrcp.pop 32.0
      %v1424 = vmul.f32 %v1422, %v1423
      %v1425 = vsub.f32 %v1417, %v1424
      %v1426 = vmul.f32 %v1425, %v1425
      %v1427 = vsel %vm772, %v1426, 0.0
      %1428 = vadd.xlane.f32.xlu0 %v1427
      %v1429 = vpop.xlane.xlu0 %1428
      %v1430 = vmul.f32 %v1429, %v1423
      %v1431 = vadd.f32 %v1430, 1e-12
      %v1432 = vrsqrt.pop %v1431
      %v1433 = vmul.f32 %v1425, %v1432
      %v1435 = vlaneseq
      %v1436 = vshrl.u32 %v1435, 7
      %v1437 = vsub.s32 0, %v1436
      %v1438 = vrot.slane %v1418, %v1437
      %v1440 = vmul.f32 %v1433, %v1438
      %v1442 = vlaneseq
      %v1443 = vshrl.u32 %v1442, 7
      %v1444 = vsub.s32 0, %v1443
      %v1445 = vrot.slane %v1419, %v1444
      %v1447 = vadd.f32 %v1440, %v1445
      %v1448 = vpack.c.bf16 %v1447, %v1447
      %v1449 = vld [vmem:[%s662] sm:$0xf]
      %v1450 = vld [vmem:[%s662 + $0x4] sm:$0xf]
      %v1451 = vld [vmem:[%s662 + $0x8] sm:$0xf]
      %v1452 = vld [vmem:[%s662 + $0xc] sm:$0xf]
      %v1453 = vld [vmem:[%s665] sm:$0x1]
      %v1455 = vlaneseq
      %v1456 = vshrl.u32 %v1455, 7
      %v1457 = vsub.s32 0, %v1456
      %v1458 = vrot.slane %v1453, %v1457
      %v1464 = vunpack.c.l.b16 %v1449
      %v1465 = vunpack.c.l.b16 %v1450
      %v1466 = vunpack.c.l.b16 %v1451
      %v1467 = vunpack.c.l.b16 %v1452
      %v1468 = vpack.c.b16 %v1465, %v1464
      %v1469 = vpack.c.b16 %v1467, %v1466
      %v1473 = vsel %vm772, %v1448, 0
      %1475 = vmatprep.subr.bf16.mxu0 0
      %1476 = vmatpush1.bf16.msra.mxu0 %v1468
      %1477 = vmatprep.subr.bf16.mxu0 0
      %1478 = vmatpush1.bf16.msra.mxu0 %v1469
      %1479 = vmatprep.subr.bf16.mxu0 0
      %1480 = vmatpush1.bf16.msra.mxu0 0
      %1481 = vmatprep.subr.bf16.mxu0 0
      %1482 = vmatpush1.bf16.msra.mxu0 0
      %1483 = vmatprep.subr.bf16.mxu0 0
      %1484 = vmatpush1.bf16.msra.mxu0 0
      %1485 = vmatprep.subr.bf16.mxu0 0
      %1486 = vmatpush1.bf16.msra.mxu0 0
      %1487 = vmatprep.subr.bf16.mxu0 0
      %1488 = vmatpush1.bf16.msra.mxu0 0
      %1489 = vmatprep.subr.bf16.mxu0 0
      %1490 = vmatpush1.bf16.msra.mxu0 0
      %1491 = vmatprep.subr.bf16.mxu0 0
      %1492 = vmatpush1.bf16.msra.mxu0 0
      %1493 = vmatprep.subr.bf16.mxu0 0
      %1494 = vmatpush1.bf16.msra.mxu0 0
      %1495 = vmatprep.subr.bf16.mxu0 0
      %1496 = vmatpush1.bf16.msra.mxu0 0
      %1497 = vmatprep.subr.bf16.mxu0 0
      %1498 = vmatpush1.bf16.msra.mxu0 0
      %1499 = vmatprep.subr.bf16.mxu0 0
      %1500 = vmatpush1.bf16.msra.mxu0 0
      %1501 = vmatprep.subr.bf16.mxu0 0
      %1502 = vmatpush1.bf16.msra.mxu0 0
      %1503 = vmatprep.subr.bf16.mxu0 0
      %1504 = vmatpush1.bf16.msra.mxu0 0
      %1505 = vmatprep.subr.bf16.mxu0 0
      %1506 = vmatpush1.bf16.msra.mxu0 0
      %1507 = vmatprep.mubr.bf16.mxu0 0
      %1508 = vmatmul.mubr.bf16.gmra.mrb[0].mxu0 %v1473
      %v1509 = vpop.f32.mrb[0].mxu0
      %v1510 = vadd.f32 %v1458, %v1509
      %v1511 = vpop.f32.mrb[0].mxu0
      %v1512 = vpop.f32.mrb[0].mxu0
      %v1513 = vpop.f32.mrb[0].mxu0
      %1514 = vdwg.mxu0
      %v1515 = vmul.f32 %v1510, 0.5
      %v1516 = vmul.f32 %v1510, 0.044715
      %v1517 = vmul.f32 %v1516, %v1510
      %v1518 = vmul.f32 %v1517, %v1510
      %v1519 = vadd.f32 %v1510, %v1518
      %v1520 = vmul.f32 %v1519, 0.7978846
      %v1521 = vtanh.pop %v1520
      %v1522 = vadd.f32 %v1521, 1.0
      %v1523 = vmul.f32 %v1515, %v1522
      %v1524 = vpack.c.bf16 %v1523, %v1523
      %v1525 = vld [vmem:[%s670] sm:$0xf]
      %v1526 = vld [vmem:[%s670 + $0x4] sm:$0xf]
      %v1527 = vld [vmem:[%s670 + $0x8] sm:$0xf]
      %v1528 = vld [vmem:[%s670 + $0xc] sm:$0xf]
      %v1529 = vld [vmem:[%s670 + $0x10] sm:$0xf]
      %v1530 = vld [vmem:[%s670 + $0x14] sm:$0xf]
      %v1531 = vld [vmem:[%s670 + $0x18] sm:$0xf]
      %v1532 = vld [vmem:[%s670 + $0x1c] sm:$0xf]
      %v1533 = vld [vmem:[%s673] sm:$0x1]
      %v1535 = vlaneseq
      %v1536 = vshrl.u32 %v1535, 7
      %v1537 = vsub.s32 0, %v1536
      %v1538 = vrot.slane %v1533, %v1537
      %v1548 = vunpack.c.l.b16 %v1525
      %v1549 = vunpack.c.l.b16 %v1526
      %v1550 = vunpack.c.l.b16 %v1527
      %v1551 = vunpack.c.l.b16 %v1528
      %v1552 = vunpack.c.l.b16 %v1529
      %v1553 = vunpack.c.l.b16 %v1530
      %v1554 = vunpack.c.l.b16 %v1531
      %v1555 = vunpack.c.l.b16 %v1532
      %v1556 = vpack.c.b16 %v1549, %v1548
      %v1557 = vpack.c.b16 %v1551, %v1550
      %v1558 = vpack.c.b16 %v1553, %v1552
      %v1559 = vpack.c.b16 %v1555, %v1554
      %vm1564 = vcmask 523264
      %v1566 = vsel %vm1564, %v1524, 0
      %1568 = vmatprep.subr.bf16.mxu0 0
      %1569 = vmatpush1.bf16.msra.mxu0 %v1556
      %1570 = vmatprep.subr.bf16.mxu0 0
      %1571 = vmatpush1.bf16.msra.mxu0 %v1557
      %1572 = vmatprep.subr.bf16.mxu0 0
      %1573 = vmatpush1.bf16.msra.mxu0 %v1558
      %1574 = vmatprep.subr.bf16.mxu0 0
      %1575 = vmatpush1.bf16.msra.mxu0 %v1559
      %1576 = vmatprep.subr.bf16.mxu0 0
      %1577 = vmatpush1.bf16.msra.mxu0 0
      %1578 = vmatprep.subr.bf16.mxu0 0
      %1579 = vmatpush1.bf16.msra.mxu0 0
      %1580 = vmatprep.subr.bf16.mxu0 0
      %1581 = vmatpush1.bf16.msra.mxu0 0
      %1582 = vmatprep.subr.bf16.mxu0 0
      %1583 = vmatpush1.bf16.msra.mxu0 0
      %1584 = vmatprep.subr.bf16.mxu0 0
      %1585 = vmatpush1.bf16.msra.mxu0 0
      %1586 = vmatprep.subr.bf16.mxu0 0
      %1587 = vmatpush1.bf16.msra.mxu0 0
      %1588 = vmatprep.subr.bf16.mxu0 0
      %1589 = vmatpush1.bf16.msra.mxu0 0
      %1590 = vmatprep.subr.bf16.mxu0 0
      %1591 = vmatpush1.bf16.msra.mxu0 0
      %1592 = vmatprep.subr.bf16.mxu0 0
      %1593 = vmatpush1.bf16.msra.mxu0 0
      %1594 = vmatprep.subr.bf16.mxu0 0
      %1595 = vmatpush1.bf16.msra.mxu0 0
      %1596 = vmatprep.subr.bf16.mxu0 0
      %1597 = vmatpush1.bf16.msra.mxu0 0
      %1598 = vmatprep.subr.bf16.mxu0 0
      %1599 = vmatpush1.bf16.msra.mxu0 0
      %1600 = vmatprep.mubr.bf16.mxu0 0
      %1601 = vmatmul.mubr.bf16.gmra.mrb[0].mxu0 %v1566
      %v1602 = vpop.f32.mrb[0].mxu0
      %v1603 = vadd.f32 %v1538, %v1602
      %v1604 = vpop.f32.mrb[0].mxu0
      %v1605 = vpop.f32.mrb[0].mxu0
      %v1606 = vpop.f32.mrb[0].mxu0
      %1607 = vdwg.mxu0
      %v1608 = vadd.f32 %v1603, %v1447
      %v1609 = vld [vmem:[%s676] sm:$0x1]
      %v1610 = vld [vmem:[%s679] sm:$0x1]
      %v1611 = vsel %vm772, %v1608, 0.0
      %1612 = vadd.xlane.f32.xlu0 %v1611
      %v1613 = vpop.xlane.xlu0 %1612
      %v1614 = vmul.f32 %v1613, %v1423
      %v1615 = vsub.f32 %v1608, %v1614
      %v1616 = vmul.f32 %v1615, %v1615
      %v1617 = vsel %vm772, %v1616, 0.0
      %1618 = vadd.xlane.f32.xlu0 %v1617
      %v1619 = vpop.xlane.xlu0 %1618
      %v1620 = vmul.f32 %v1619, %v1423
      %v1621 = vadd.f32 %v1620, 1e-12
      %v1622 = vrsqrt.pop %v1621
      %v1623 = vmul.f32 %v1615, %v1622
      %v1625 = vlaneseq
      %v1626 = vshrl.u32 %v1625, 7
      %v1627 = vsub.s32 0, %v1626
      %v1628 = vrot.slane %v1609, %v1627
      %v1630 = vmul.f32 %v1623, %v1628
      %v1632 = vlaneseq
      %v1633 = vshrl.u32 %v1632, 7
      %v1634 = vsub.s32 0, %v1633
      %v1635 = vrot.slane %v1610, %v1634
      %v1637 = vadd.f32 %v1630, %v1635
      %1638 = vst.msk [vmem:[%s683] sm:$0xff] %vm772, %v1637
      %p1639 = scmp.lt.s32.totalorder %s29, 1
      %s1640 = scalar_select %p1639, %s29, 1
      %s1641 = smul.addr %s1640, 8
      %s1642 = scalar_lea.vmem %s14, %s1641
      // Predicated region
      $region81: #{bert_forward.1} parent=75 // pred_check
        %p1643 = pneg %p419
      $region82: #{bert_forward.1} parent=75 // pred_check_branch
        %1645 = sbr.rel (%p1643) target = $region84
      $region83: #{bert_forward.1} parent=75 // pred_region
        _
      $region84: #{bert_forward.1} parent=75 // pred_fallthru
        _
    $region76: #{bert_forward.1} parent=5 // pred_fallthru
      _
    %p1646 = scmp.le.s32.totalorder 2, %s20
    // Predicated region
    $region85: #{bert_forward.1} parent=5 // pred_check
      %p1647 = pneg %p1646
    $region86: #{bert_forward.1} parent=5 // pred_check_branch
      %1649 = sbr.rel (%p1647) target = $region88
    $region87: #{bert_forward.1} parent=5 // pred_region
      %s1650 = ssub.s32 %s20, 2
      // Predicated region
      $region89: #{bert_forward.1} parent=87 // pred_check
        %p1651 = pneg %p425
      $region90: #{bert_forward.1} parent=87 // pred_check_branch
        %1653 = sbr.rel (%p1651) target = $region92
      $region91: #{bert_forward.1} parent=87 // pred_region
        %p1654 = scmp.lt.s32.totalorder %s31, 1
        %s1655 = scalar_select %p1654, %s31, 1
        %s1656 = smul.addr %s1655, 8
        %s1657 = scalar_lea.vmem %s14, %s1656
      $region92: #{bert_forward.1} parent=87 // pred_fallthru
        _
    $region88: #{bert_forward.1} parent=5 // pred_fallthru
      _
  $region6: #{bert_forward.1} parent=0 // loop_footer
    %s24 = sadd.s32 1, %s20
  $region7: #{bert_forward.1} parent=0 // loop_footer_branch
    %19 = sbr.rel target = $region3
  $region8: #{bert_forward.1} parent=0 // loop_exit
    _

</llo_original>
